<compile_context>
chip_gen: v5e
topology: v5e:2x2
jax: 0.10.0
libtpu: 0.0.40
codegen_flags: <defaults>
</compile_context>

<pallas_src>
import functools
import numpy as np

import jax
import jax.numpy as jnp
from jax import lax
from jax.experimental import pallas as pl
from jax.experimental.pallas import tpu as pltpu

EPS = 1e-5


# ----------------------------------------------------------------------------
# Pallas kernel: stride-1 kxk conv, kw folded into the contraction axis
# ----------------------------------------------------------------------------
def _dbb_conv_kernel(x_ref, w_ref, b_ref, o_ref, *, K, TH, OW, Cp):
    """x_ref: (1, Hp, Wp, Cp) bf16 whole padded image of one batch element
              (resident across the row-tile grid axis)
       w_ref: (K, K*Cp, Cp) bf16 folded weights, kw folded into contraction
       b_ref: (1, Cp) f32 folded bias
       o_ref: (1, TH, OW, Cp) bf16 output row tile."""
    r = pl.program_id(1)
    row0 = pl.multiple_of(r * TH, TH)

    acc = None
    for kh in range(K):
        # im2col slab: K width-shifted views concatenated along the lane axis.
        parts = [x_ref[0, pl.ds(row0 + kh, TH), pl.ds(kw, OW), :]
                 for kw in range(K)]
        slab = jnp.concatenate(parts, axis=-1).reshape(TH * OW, K * Cp)
        contrib = jnp.dot(slab, w_ref[kh], preferred_element_type=jnp.float32)
        acc = contrib if acc is None else acc + contrib

    o_ref[0] = (acc + b_ref[...]).reshape(TH, OW, Cp).astype(o_ref.dtype)


def _pick_row_tile(OH, OW, target_rows=512):
    """Largest divisor TH of OH with TH*OW <= ~target_rows matmul rows."""
    th_target = max(1, target_rows // max(OW, 1))
    best = 1
    for t in range(1, min(th_target, OH) + 1):
        if OH % t == 0:
            best = t
    return best


def dbb_conv(x_padded, w_taps, bias, K, OH, OW, TH):
    """x_padded: (B, Hp, Wp, Cp) bf16; w_taps: (K, K*Cp, Cp) bf16;
       bias: (1, Cp) f32.  Returns (B, OH, OW, Cp) bf16."""
    B, Hp, Wp, Cp = x_padded.shape
    assert OH % TH == 0
    n_row = OH // TH

    # VMEM budget (double-buffered blocks + in-kernel slab/acc) with headroom.
    x_block_bytes = Hp * Wp * Cp * 2
    w_bytes = K * (K * Cp) * Cp * 2
    out_block_bytes = TH * OW * Cp * 2
    slab_bytes = TH * OW * K * Cp * 2 + 2 * TH * OW * Cp * 4
    need = 2 * (x_block_bytes + w_bytes + out_block_bytes + Cp * 4) + slab_bytes
    vmem_limit = int(min(max(need + (8 << 20), 32 << 20), 96 << 20))
    # Whole-image residency guard (see TODO about v7x halo row strips).
    assert 2 * (x_block_bytes + w_bytes) < (48 << 20), "image too large for VMEM"

    cost = pl.CostEstimate(
        flops=2 * B * OH * OW * K * K * Cp * Cp,
        transcendentals=0,
        bytes_accessed=B * x_block_bytes + w_bytes + Cp * 4
                       + B * OH * OW * Cp * 2)

    kern = functools.partial(_dbb_conv_kernel, K=K, TH=TH, OW=OW, Cp=Cp)
    return pl.pallas_call(
        kern,
        out_shape=jax.ShapeDtypeStruct((B, OH, OW, Cp), jnp.bfloat16),
        grid=(B, n_row),
        in_specs=[
            pl.BlockSpec((1, Hp, Wp, Cp), lambda b, r: (b, 0, 0, 0)),
            pl.BlockSpec((K, K * Cp, Cp), lambda b, r: (0, 0, 0)),
            pl.BlockSpec((1, Cp), lambda b, r: (0, 0)),
        ],
        out_specs=pl.BlockSpec((1, TH, OW, Cp), lambda b, r: (b, r, 0, 0)),
        compiler_params=pltpu.CompilerParams(
            dimension_semantics=("parallel", "parallel"),
            vmem_limit_bytes=vmem_limit),
        cost_estimate=cost,
    )(x_padded, w_taps, bias)


# ----------------------------------------------------------------------------
# Parameter folding glue (mirrors transI/II/III/V/VI/IX of the module)
# ----------------------------------------------------------------------------
def fold_bn(bn):
    gamma, beta, mean, var = bn
    scale = gamma / jnp.sqrt(var + EPS)
    shift = beta - mean * scale
    return scale, shift


def fuse_conv_bn(w_oihw, conv_bias, bn):
    """Fold eval-mode BN into the preceding conv (transI_fusebn)."""
    gamma, beta, mean, var = bn
    s = gamma / jnp.sqrt(var + EPS)
    w = w_oihw * s[:, None, None, None]
    b0 = conv_bias if conv_bias is not None else 0.0
    b = beta + (b0 - mean) * s
    return w, b


def multiscale(w, k):
    """Zero-pad an (O,I,kh,kw) kernel to (O,I,k,k), centered (transVI)."""
    _, _, kh, kw = w.shape
    ph, pw = (k - kh) // 2, (k - kw) // 2
    return jnp.pad(w, ((0, 0), (0, 0), (ph, k - kh - ph), (pw, k - kw - pw)))


def compose_1x1_kxk(w1, b1, w2, b2):
    """1x1 conv (w1,b1) followed by kxk conv (w2,b2), groups=1 (transIII).
       Exact including borders because BNAndPad pads with the folded BN shift b1."""
    w = jnp.einsum('omhw,mi->oihw', w2, w1[:, :, 0, 0])
    b = b2 + jnp.einsum('omhw,m->o', w2, b1)
    return w, b


def fold_dbb_params(P, C):
    """Fold all 7 branches (eval-mode BN) into one (C,C,k,k) weight + (C,) bias."""
    k = P['k']
    ws, bs = [], []

    # dbb_kxk: conv kxk (bias) -> BN
    w, b = fuse_conv_bn(P['W_kxk'], P['b_kxk'], P['bn_kxk'])
    ws.append(w); bs.append(b)

    # dbb_1x1: conv 1x1 -> BN
    w, b = fuse_conv_bn(P['W_1x1'], None, P['bn_1x1'])
    ws.append(multiscale(w, k)); bs.append(b)

    # dbb_1x1_kxk: conv1x1 -> BNAndPad -> conv kxk -> BN
    w1, b1 = fuse_conv_bn(P['W_a'], None, P['bn_mid_a'])
    w2, b2 = fuse_conv_bn(P['W_b'], None, P['bn_kxk_b'])
    w, b = compose_1x1_kxk(w1, b1, w2, b2)
    ws.append(w); bs.append(b)

    # dbb_1x1_avg: conv1x1 -> BNAndPad -> AvgPool(k) -> BN
    w1, b1 = fuse_conv_bn(P['W_c'], None, P['bn_mid_c'])
    w_avg = (jnp.eye(C, dtype=jnp.float32) / (k * k))[:, :, None, None] \
        * jnp.ones((1, 1, k, k), jnp.float32)
    w2, b2 = fuse_conv_bn(w_avg, None, P['bn_avg'])
    w, b = compose_1x1_kxk(w1, b1, w2, b2)
    ws.append(w); bs.append(b)

    # dbb_1xk / dbb_kx1
    w, b = fuse_conv_bn(P['W_1xk'], None, P['bn_1xk'])
    ws.append(multiscale(w, k)); bs.append(b)
    w, b = fuse_conv_bn(P['W_kx1'], None, P['bn_kx1'])
    ws.append(multiscale(w, k)); bs.append(b)

    # dbb_id: BN as scaled-identity 1x1 (transIX): wid[o,i] = delta(o,i)*s[o]
    s, t = fold_bn(P['bn_id'])
    wid = jnp.eye(C, dtype=jnp.float32)[:, :, None, None] * s[:, None, None, None]
    ws.append(multiscale(wid, k)); bs.append(t)

    return sum(ws), sum(bs)


# ----------------------------------------------------------------------------
# DiverseBranchBlock forward (Pallas)
# ----------------------------------------------------------------------------
def dbb_forward(x_nchw, P):
    k = P['k']
    p = k // 2
    B, C, H, W = x_nchw.shape
    # Kernel supports stride=1, groups=1, eval-mode BN, Cin==Cout (id branch).
    assert k % 2 == 1, "odd kernel size required for 'same' output"
    assert P['W_kxk'].shape == (C, C, k, k), "groups=1 and Cin==Cout required"

    # --- reparameterize the whole block into one kxk conv (tiny XLA glue, f32)
    w_eq, b_eq = fold_dbb_params(P, C)            # (C, C, k, k), (C,)

    # --- layout: NCHW -> NHWC in bf16 BEFORE padding; lanes padded to 128,
    #     W padded to a multiple of 8 (sublane-aligned width slices).
    Cp = ((C + 127) // 128) * 128
    Hp = H + 2 * p
    Wp_raw = W + 2 * p
    Wp = ((Wp_raw + 7) // 8) * 8

    x = jnp.transpose(x_nchw.astype(jnp.bfloat16), (0, 2, 3, 1))
    x = jnp.pad(x, ((0, 0), (p, p), (p, p + (Wp - Wp_raw)), (0, Cp - C)))

    # weights: (O,I,kh,kw) -> (kh, kw, Ipad, Opad) -> (kh, kw*Cp + i, o)
    wt = jnp.transpose(w_eq, (2, 3, 1, 0))
    wt = jnp.pad(wt, ((0, 0), (0, 0), (0, Cp - C), (0, Cp - C)))
    wt = wt.reshape(k, k * Cp, Cp).astype(jnp.bfloat16)
    bias = jnp.pad(b_eq, (0, Cp - C)).reshape(1, Cp).astype(jnp.float32)

    OH, OW = H, W
    TH = _pick_row_tile(OH, OW)

    out = dbb_conv(x, wt, bias, k, OH, OW, TH)    # (B, OH, OW, Cp) bf16
    out = jnp.transpose(out[..., :C], (0, 3, 1, 2))              # NHWC -> NCHW
    return out.astype(jnp.float32)


# ----------------------------------------------------------------------------
# Pure-JAX reference: direct multi-branch eval-mode forward (ground truth)
# ----------------------------------------------------------------------------
def _conv_ref(x, w_oihw, pad):
    w = jnp.transpose(w_oihw, (2, 3, 1, 0))   # OIHW -> HWIO
    return lax.conv_general_dilated(x, w, (1, 1), pad,
                                    dimension_numbers=('NHWC', 'HWIO', 'NHWC'))


def _bn_ref(x, bn):
    gamma, beta, mean, var = bn
    return (x - mean) / jnp.sqrt(var + EPS) * gamma + beta


def pad_const(x, p, vals):
    """Pad NHWC tensor spatially by p with per-channel constants (BNAndPad)."""
    B, H, W, C = x.shape
    out = jnp.ones((B, H + 2 * p, W + 2 * p, C), x.dtype) * vals.reshape(1, 1, 1, C)
    return out.at[:, p:p + H, p:p + W, :].set(x)


def dbb_forward_ref(x_nchw, P):
    x = jnp.transpose(x_nchw, (0, 2, 3, 1)).astype(jnp.float32)
    k = P['k']
    p = k // 2
    outs = []
    outs.append(_bn_ref(_conv_ref(x, P['W_kxk'], ((p, p), (p, p))) + P['b_kxk'],
                        P['bn_kxk']))
    outs.append(_bn_ref(_conv_ref(x, P['W_1x1'], ((0, 0), (0, 0))), P['bn_1x1']))

    mid = _bn_ref(_conv_ref(x, P['W_a'], ((0, 0), (0, 0))), P['bn_mid_a'])
    g, b, m, v = P['bn_mid_a']
    midp = pad_const(mid, p, b - m * g / jnp.sqrt(v + EPS))
    outs.append(_bn_ref(_conv_ref(midp, P['W_b'], ((0, 0), (0, 0))), P['bn_kxk_b']))

    mid = _bn_ref(_conv_ref(x, P['W_c'], ((0, 0), (0, 0))), P['bn_mid_c'])
    g, b, m, v = P['bn_mid_c']
    midp = pad_const(mid, p, b - m * g / jnp.sqrt(v + EPS))
    avg = lax.reduce_window(midp, 0.0, lax.add, (1, k, k, 1), (1, 1, 1, 1),
                            'VALID') / (k * k)
    outs.append(_bn_ref(avg, P['bn_avg']))

    outs.append(_bn_ref(_conv_ref(x, P['W_1xk'], ((0, 0), (p, p))), P['bn_1xk']))
    outs.append(_bn_ref(_conv_ref(x, P['W_kx1'], ((p, p), (0, 0))), P['bn_kx1']))
    outs.append(_bn_ref(x, P['bn_id']))
    out = sum(outs)
    return jnp.transpose(out, (0, 3, 1, 2))


# ----------------------------------------------------------------------------
# Deterministic parameter construction (shapes as in DiverseBranchBlock.__init__)
# ----------------------------------------------------------------------------
def make_params(key, C, k):
    ks = jax.random.split(key, 17)

    def bn(kk):
        a, b, c, d = jax.random.split(kk, 4)
        return (jax.random.uniform(a, (C,), minval=0.5, maxval=1.5),   # gamma
                jax.random.normal(b, (C,)) * 0.1,                      # beta
                jax.random.normal(c, (C,)) * 0.1,                      # running_mean
                jax.random.uniform(d, (C,), minval=0.5, maxval=1.5))   # running_var

    P = dict(k=k)
    P['W_kxk'] = jax.random.normal(ks[0], (C, C, k, k)) * 0.2
    P['b_kxk'] = jax.random.normal(ks[1], (C,)) * 0.1
    P['bn_kxk'] = bn(ks[2])
    P['W_1x1'] = jax.random.normal(ks[3], (C, C, 1, 1)) * 0.2
    P['bn_1x1'] = bn(ks[4])
    P['W_a'] = jax.random.normal(ks[5], (C, C, 1, 1)) * 0.2        # 1x1_kxk.conv1
    P['bn_mid_a'] = bn(ks[6])                                      # 1x1_kxk.bn1 (BNAndPad)
    P['W_b'] = jax.random.normal(ks[7], (C, C, k, k)) * 0.2        # 1x1_kxk.conv2
    P['bn_kxk_b'] = bn(ks[8])                                      # 1x1_kxk.bn2
    P['W_c'] = jax.random.normal(ks[9], (C, C, 1, 1)) * 0.2        # 1x1_avg.conv
    P['bn_mid_c'] = bn(ks[10])                                     # 1x1_avg.bn (BNAndPad)
    P['bn_avg'] = bn(ks[11])                                       # 1x1_avg.avgbn
    P['W_1xk'] = jax.random.normal(ks[12], (C, C, 1, k)) * 0.2
    P['bn_1xk'] = bn(ks[13])
    P['W_kx1'] = jax.random.normal(ks[14], (C, C, k, 1)) * 0.2
    P['bn_kx1'] = bn(ks[15])
    P['bn_id'] = bn(ks[16])
    return P


if __name__ == "__main__":
    key = jax.random.PRNGKey(0)
    kx, kp = jax.random.split(key)
    B, C, H, W, k = 2, 4, 16, 16, 3          # in_channels == out_channels, stride 1
    x = jax.random.normal(kx, (B, C, H, W), dtype=jnp.float32)
    P = make_params(kp, C, k)

    out = jax.block_until_ready(dbb_forward(x, P))
    assert out.shape == (B, C, H, W)

    ref = dbb_forward_ref(x, P)
    # bf16 matmul inputs + bf16 output (f32 accumulation) -> loosened tolerance
    np.testing.assert_allclose(np.asarray(out), np.asarray(ref),
                               rtol=3e-2, atol=3e-2)
    print("KERNEL_OK")
</pallas_src>

<mosaic_0001>
module attributes {stable_mosaic.version = 11 : i64} {
  func.func @_dbb_conv_kernel(%arg0: i32, %arg1: i32, %arg2: memref<1x18x24x128xbf16, #tpu.memory_space<vmem>>, %arg3: memref<3x384x128xbf16, #tpu.memory_space<vmem>>, %arg4: memref<1x128xf32, #tpu.memory_space<vmem>>, %arg5: memref<1x16x16x128xbf16, #tpu.memory_space<vmem>>) attributes {dimension_semantics = [#tpu.dimension_semantics<parallel>, #tpu.dimension_semantics<parallel>], iteration_bounds = array<i64: 2, 1>, scalar_prefetch = 0 : i64, scratch_operands = 0 : i64, tpu.core_type = #tpu.core_type<tc>, window_params = [{transform_indices = @transform_0, window_bounds = array<i64: 1, 18, 24, 128>}, {pipeline_mode = #tpu.pipeline_mode<synchronous>, transform_indices = @transform_1, window_bounds = array<i64: 3, 384, 128>}, {pipeline_mode = #tpu.pipeline_mode<synchronous>, transform_indices = @transform_2, window_bounds = array<i64: 1, 128>}, {transform_indices = @transform_3, window_bounds = array<i64: 1, 16, 16, 128>}]} {
    %c16_i32 = arith.constant 16 : i32
    %0 = arith.muli %arg1, %c16_i32 : i32
    %1 = tpu.assume_multiple %0, 16 : i32
    %c0_i32 = arith.constant 0 : i32
    %2 = arith.addi %1, %c0_i32 : i32
    %c0 = arith.constant 0 : index
    %3 = arith.index_cast %2 : i32 to index
    %c0_0 = arith.constant 0 : index
    %c0_1 = arith.constant 0 : index
    %4 = vector.load %arg2[%c0, %3, %c0_0, %c0_1] : memref<1x18x24x128xbf16, #tpu.memory_space<vmem>>, vector<1x16x16x128xbf16>
    %5 = vector.shape_cast %4 : vector<1x16x16x128xbf16> to vector<16x16x128xbf16>
    %c0_i32_2 = arith.constant 0 : i32
    %6 = arith.addi %1, %c0_i32_2 : i32
    %c0_3 = arith.constant 0 : index
    %7 = arith.index_cast %6 : i32 to index
    %c1 = arith.constant 1 : index
    %c0_4 = arith.constant 0 : index
    %8 = vector.load %arg2[%c0_3, %7, %c1, %c0_4] : memref<1x18x24x128xbf16, #tpu.memory_space<vmem>>, vector<1x16x16x128xbf16>
    %9 = vector.shape_cast %8 : vector<1x16x16x128xbf16> to vector<16x16x128xbf16>
    %c0_i32_5 = arith.constant 0 : i32
    %10 = arith.addi %1, %c0_i32_5 : i32
    %c0_6 = arith.constant 0 : index
    %11 = arith.index_cast %10 : i32 to index
    %c2 = arith.constant 2 : index
    %c0_7 = arith.constant 0 : index
    %12 = vector.load %arg2[%c0_6, %11, %c2, %c0_7] : memref<1x18x24x128xbf16, #tpu.memory_space<vmem>>, vector<1x16x16x128xbf16>
    %13 = vector.shape_cast %12 : vector<1x16x16x128xbf16> to vector<16x16x128xbf16>
    %14 = tpu.concatenate %5, %9, %13 in 2 : vector<16x16x128xbf16>, vector<16x16x128xbf16>, vector<16x16x128xbf16> -> vector<16x16x384xbf16>
    %15 = vector.shape_cast %14 : vector<16x16x384xbf16> to vector<256x384xbf16>
    %c0_8 = arith.constant 0 : index
    %c0_9 = arith.constant 0 : index
    %c0_10 = arith.constant 0 : index
    %16 = vector.load %arg3[%c0_8, %c0_9, %c0_10] : memref<3x384x128xbf16, #tpu.memory_space<vmem>>, vector<1x384x128xbf16>
    %17 = vector.shape_cast %16 : vector<1x384x128xbf16> to vector<384x128xbf16>
    %cst = arith.constant dense<0.000000e+00> : vector<256x128xf32>
    %18 = tpu.matmul %15, %17, %cst {dimension_numbers = #tpu.dot_dimension_numbers<[1], [0], [0], [1], [0, 0, 1, 1], [], []>} : vector<256x384xbf16>, vector<384x128xbf16>, vector<256x128xf32> -> vector<256x128xf32>
    %c1_i32 = arith.constant 1 : i32
    %19 = arith.addi %1, %c1_i32 : i32
    %c0_11 = arith.constant 0 : index
    %20 = arith.index_cast %19 : i32 to index
    %c0_12 = arith.constant 0 : index
    %c0_13 = arith.constant 0 : index
    %21 = vector.load %arg2[%c0_11, %20, %c0_12, %c0_13] : memref<1x18x24x128xbf16, #tpu.memory_space<vmem>>, vector<1x16x16x128xbf16>
    %22 = vector.shape_cast %21 : vector<1x16x16x128xbf16> to vector<16x16x128xbf16>
    %c1_i32_14 = arith.constant 1 : i32
    %23 = arith.addi %1, %c1_i32_14 : i32
    %c0_15 = arith.constant 0 : index
    %24 = arith.index_cast %23 : i32 to index
    %c1_16 = arith.constant 1 : index
    %c0_17 = arith.constant 0 : index
    %25 = vector.load %arg2[%c0_15, %24, %c1_16, %c0_17] : memref<1x18x24x128xbf16, #tpu.memory_space<vmem>>, vector<1x16x16x128xbf16>
    %26 = vector.shape_cast %25 : vector<1x16x16x128xbf16> to vector<16x16x128xbf16>
    %c1_i32_18 = arith.constant 1 : i32
    %27 = arith.addi %1, %c1_i32_18 : i32
    %c0_19 = arith.constant 0 : index
    %28 = arith.index_cast %27 : i32 to index
    %c2_20 = arith.constant 2 : index
    %c0_21 = arith.constant 0 : index
    %29 = vector.load %arg2[%c0_19, %28, %c2_20, %c0_21] : memref<1x18x24x128xbf16, #tpu.memory_space<vmem>>, vector<1x16x16x128xbf16>
    %30 = vector.shape_cast %29 : vector<1x16x16x128xbf16> to vector<16x16x128xbf16>
    %31 = tpu.concatenate %22, %26, %30 in 2 : vector<16x16x128xbf16>, vector<16x16x128xbf16>, vector<16x16x128xbf16> -> vector<16x16x384xbf16>
    %32 = vector.shape_cast %31 : vector<16x16x384xbf16> to vector<256x384xbf16>
    %c1_22 = arith.constant 1 : index
    %c0_23 = arith.constant 0 : index
    %c0_24 = arith.constant 0 : index
    %33 = vector.load %arg3[%c1_22, %c0_23, %c0_24] : memref<3x384x128xbf16, #tpu.memory_space<vmem>>, vector<1x384x128xbf16>
    %34 = vector.shape_cast %33 : vector<1x384x128xbf16> to vector<384x128xbf16>
    %cst_25 = arith.constant dense<0.000000e+00> : vector<256x128xf32>
    %35 = tpu.matmul %32, %34, %cst_25 {dimension_numbers = #tpu.dot_dimension_numbers<[1], [0], [0], [1], [0, 0, 1, 1], [], []>} : vector<256x384xbf16>, vector<384x128xbf16>, vector<256x128xf32> -> vector<256x128xf32>
    %36 = arith.addf %18, %35 : vector<256x128xf32>
    %c2_i32 = arith.constant 2 : i32
    %37 = arith.addi %1, %c2_i32 : i32
    %c0_26 = arith.constant 0 : index
    %38 = arith.index_cast %37 : i32 to index
    %c0_27 = arith.constant 0 : index
    %c0_28 = arith.constant 0 : index
    %39 = vector.load %arg2[%c0_26, %38, %c0_27, %c0_28] : memref<1x18x24x128xbf16, #tpu.memory_space<vmem>>, vector<1x16x16x128xbf16>
    %40 = vector.shape_cast %39 : vector<1x16x16x128xbf16> to vector<16x16x128xbf16>
    %c2_i32_29 = arith.constant 2 : i32
    %41 = arith.addi %1, %c2_i32_29 : i32
    %c0_30 = arith.constant 0 : index
    %42 = arith.index_cast %41 : i32 to index
    %c1_31 = arith.constant 1 : index
    %c0_32 = arith.constant 0 : index
    %43 = vector.load %arg2[%c0_30, %42, %c1_31, %c0_32] : memref<1x18x24x128xbf16, #tpu.memory_space<vmem>>, vector<1x16x16x128xbf16>
    %44 = vector.shape_cast %43 : vector<1x16x16x128xbf16> to vector<16x16x128xbf16>
    %c2_i32_33 = arith.constant 2 : i32
    %45 = arith.addi %1, %c2_i32_33 : i32
    %c0_34 = arith.constant 0 : index
    %46 = arith.index_cast %45 : i32 to index
    %c2_35 = arith.constant 2 : index
    %c0_36 = arith.constant 0 : index
    %47 = vector.load %arg2[%c0_34, %46, %c2_35, %c0_36] : memref<1x18x24x128xbf16, #tpu.memory_space<vmem>>, vector<1x16x16x128xbf16>
    %48 = vector.shape_cast %47 : vector<1x16x16x128xbf16> to vector<16x16x128xbf16>
    %49 = tpu.concatenate %40, %44, %48 in 2 : vector<16x16x128xbf16>, vector<16x16x128xbf16>, vector<16x16x128xbf16> -> vector<16x16x384xbf16>
    %50 = vector.shape_cast %49 : vector<16x16x384xbf16> to vector<256x384xbf16>
    %c2_37 = arith.constant 2 : index
    %c0_38 = arith.constant 0 : index
    %c0_39 = arith.constant 0 : index
    %51 = vector.load %arg3[%c2_37, %c0_38, %c0_39] : memref<3x384x128xbf16, #tpu.memory_space<vmem>>, vector<1x384x128xbf16>
    %52 = vector.shape_cast %51 : vector<1x384x128xbf16> to vector<384x128xbf16>
    %cst_40 = arith.constant dense<0.000000e+00> : vector<256x128xf32>
    %53 = tpu.matmul %50, %52, %cst_40 {dimension_numbers = #tpu.dot_dimension_numbers<[1], [0], [0], [1], [0, 0, 1, 1], [], []>} : vector<256x384xbf16>, vector<384x128xbf16>, vector<256x128xf32> -> vector<256x128xf32>
    %54 = arith.addf %36, %53 : vector<256x128xf32>
    %c0_41 = arith.constant 0 : index
    %c0_42 = arith.constant 0 : index
    %55 = vector.load %arg4[%c0_41, %c0_42] : memref<1x128xf32, #tpu.memory_space<vmem>>, vector<1x128xf32>
    %56 = vector.broadcast %55 : vector<1x128xf32> to vector<256x128xf32>
    %57 = arith.addf %54, %56 : vector<256x128xf32>
    %58 = vector.shape_cast %57 : vector<256x128xf32> to vector<16x16x128xf32>
    %59 = arith.truncf %58 : vector<16x16x128xf32> to vector<16x16x128xbf16>
    %c0_43 = arith.constant 0 : index
    %c0_44 = arith.constant 0 : index
    %c0_45 = arith.constant 0 : index
    %c0_46 = arith.constant 0 : index
    %60 = vector.load %arg5[%c0_43, %c0_44, %c0_45, %c0_46] : memref<1x16x16x128xbf16, #tpu.memory_space<vmem>>, vector<1x16x16x128xbf16>
    %61 = vector.shape_cast %60 : vector<1x16x16x128xbf16> to vector<16x16x128xbf16>
    %62 = vector.shape_cast %59 : vector<16x16x128xbf16> to vector<1x16x16x128xbf16>
    tpu.vector_store %arg5[%c0_43, %c0_44, %c0_45, %c0_46], %62 {strides = array<i32>} : memref<1x16x16x128xbf16, #tpu.memory_space<vmem>>, vector<1x16x16x128xbf16>,
    return
  }
  func.func @transform_0(%arg0: i32, %arg1: i32) -> (i32, i32, i32, i32) {
    %c0_i32 = arith.constant 0 : i32
    %c0_i32_0 = arith.constant 0 : i32
    %c0_i32_1 = arith.constant 0 : i32
    %c0_i32_2 = arith.constant 0 : i32
    return %arg0, %c0_i32, %c0_i32_0, %c0_i32_1 : i32, i32, i32, i32
  }
  func.func @transform_1(%arg0: i32, %arg1: i32) -> (i32, i32, i32) {
    %c0_i32 = arith.constant 0 : i32
    %c0_i32_0 = arith.constant 0 : i32
    %c0_i32_1 = arith.constant 0 : i32
    %c0_i32_2 = arith.constant 0 : i32
    return %c0_i32, %c0_i32_0, %c0_i32_1 : i32, i32, i32
  }
  func.func @transform_2(%arg0: i32, %arg1: i32) -> (i32, i32) {
    %c0_i32 = arith.constant 0 : i32
    %c0_i32_0 = arith.constant 0 : i32
    %c0_i32_1 = arith.constant 0 : i32
    return %c0_i32, %c0_i32_0 : i32, i32
  }
  func.func @transform_3(%arg0: i32, %arg1: i32) -> (i32, i32, i32, i32) {
    %c0_i32 = arith.constant 0 : i32
    %c0_i32_0 = arith.constant 0 : i32
    %c0_i32_1 = arith.constant 0 : i32
    return %arg0, %arg1, %c0_i32, %c0_i32_0 : i32, i32, i32, i32
  }
}

</mosaic_0001>

<llo_original>
// kernel: tpu_custom_call.1
$region0: #{tpu_custom_call.1}
  #allocation0 [shape = 'u32[]', space=smem, size = 0x4, offset = 0x4, fixed_abs, tag = 'smem constant byte address 0x4 - core index']
  #allocation1 [shape = 'u32[72,128]{1,0:T(1,128)}', space=vmem, size = 0x9000, scoped, tag = 'internal scratch']
  %s0 = inlined_call_operand.hbm [shape: bf16[2,18,24,128], index: 0, kind: input, shape index: {}]
  %s1 = inlined_call_operand.hbm [shape: bf16[3,384,128], index: 1, kind: input, shape index: {}]
  %s2 = inlined_call_operand.vmem [shape: f32[1,128], index: 2, kind: input, shape index: {}]
  %s3 = inlined_call_operand.hbm [shape: bf16[2,16,16,128], index: 3, kind: output, shape index: {}]
  %s4 = sld [smem:[#allocation0]]
  $region53: #{tpu_custom_call.1} parent=0
    _
  %s6 = ssub.s32 1, %s4
  %s7 = scalar_select 0, %s6, %s4
  $region1: #{tpu_custom_call.1} parent=0
    #allocation2 [shape = 'u8[221184]{0}', space=vmem, size = 0x36000, scoped, tag = 'input window, operand 0']
    #allocation3 [shape = 's32[2]{0}', space=sflag, size = 0x8, scoped, tag = 'scoped memory for tpu_custom_call.1']
    #allocation4 [shape = 's32[2]{0}', space=sflag, size = 0x8, scoped, tag = 'scoped memory for tpu_custom_call.1']
    #allocation5 [shape = 'u8[294912]{0}', space=vmem, size = 0x48000, scoped, tag = 'input window, operand 1, single buffered']
    #allocation6 [shape = 's32[1]{0}', space=sflag, size = 0x4, scoped, tag = 'scoped memory for tpu_custom_call.1']
    #allocation7 [shape = 'u8[131072]{0}', space=vmem, size = 0x20000, scoped, tag = 'output window, operand 0']
    %8 = vsyncpa [#allocation3], 0
    %s9 = scalar_lea.sflag [#allocation3], 1
    %10 = vsyncpa %s9, 0
    %11 = vsyncpa [#allocation6], 0
    %12 = vsyncpa [#allocation4], 0
    %s13 = scalar_lea.sflag [#allocation4], 1
    %14 = vsyncpa %s13, 0
    loop: start=0, step=1, limit=4
    $region2: #{tpu_custom_call.1} parent=1 // loop_pre_header
      _
    $region3: #{tpu_custom_call.1} parent=1 // loop_header
      %s16 = sphi 0, %s20
      %p17 = scmp.ge.s32.totalorder %s16, 4
      %s23 = sphi 0, %s35
      %s24 = sphi 0, %s31
      %s25 = sphi 0, %s23
      %s26 = sphi 0, %s24
      %s27 = sphi 0, %s25
      %s28 = sphi 0, %s26
      %s38 = sphi 0, %s40
      %s41 = sphi 0, %s38
      %s42 = sphi 0, %s41
      %s58 = sphi 0, %s42
      %s62 = sphi 0, %s62
      %s64 = sphi 0, %s62
      %s65 = sphi 0, %s64
      %s79 = sphi 0, %s65
      %s83 = sphi 0, %s83
      %s85 = sphi 0, %s83
      %s86 = sphi 0, %s85
      %s100 = sphi 0, %s86
      %s108 = sphi 0, %s110
      %s111 = sphi 0, %s108
      %s112 = sphi 0, %s111
      %s128 = sphi 0, %s112
    $region4: #{tpu_custom_call.1} parent=1 // loop_header_branch
      %19 = sbr.rel (%p17) target = $region8
    $region5: #{tpu_custom_call.1} parent=1 // loop_body
      %s21 = ssub.s32 %s16, 1
      %s22 = ssub.s32 %s16, 2
      %s29 = sadd.s32 1, %s24
      %p30 = scmp.ge.s32.totalorder %s29, 1
      %s31 = scalar_select %p30, 0, %s29
      %s32 = sadd.s32 1, %s23
      %s33 = scalar_select %p30, %s32, %s23
      %p34 = scmp.ge.s32.totalorder %s33, 2
      %s35 = scalar_select %p34, 0, %s33
      %s36 = ssub.s32 %s23, %s35
      %p37 = scmp.eq.s32.totalorder %s36, 0
      %s39 = sadd.s32 %s38, 1
      %s40 = scalar_select %p37, %s38, %s39
      %p43 = pneg %p37
      %p44 = scmp.eq.s32.totalorder %s16, 1
      %p45 = por %p43, %p44
      %p46 = scmp.ne.s32.totalorder %s38, %s41
      %p47 = scmp.eq.s32.totalorder %s16, 0
      %p48 = por %p46, %p47
      %p49 = scmp.ne.s32.totalorder %s38, %s41
      %p50 = scmp.eq.s32.totalorder %s21, 1
      %p51 = por %p49, %p50
      %p52 = scmp.ne.s32.totalorder %s41, %s42
      %p53 = scmp.eq.s32.totalorder %s21, 0
      %p54 = por %p52, %p53
      %p55 = scmp.ne.s32.totalorder %s41, %s42
      %p56 = scmp.eq.s32.totalorder %s22, 1
      %p57 = por %p55, %p56
      %p59 = scmp.ne.s32.totalorder %s42, %s58
      %p60 = scmp.eq.s32.totalorder %s22, 0
      %p61 = por %p59, %p60
      %s63 = sadd.s32 %s62, 1
      %p66 = scmp.eq.s32.totalorder %s16, 1
      %p67 = scmp.ne.s32.totalorder %s62, %s64
      %p68 = scmp.eq.s32.totalorder %s16, 0
      %p69 = por %p67, %p68
      %p70 = scmp.ne.s32.totalorder %s62, %s64
      %p71 = scmp.eq.s32.totalorder %s21, 1
      %p72 = por %p70, %p71
      %p73 = scmp.ne.s32.totalorder %s64, %s65
      %p74 = scmp.eq.s32.totalorder %s21, 0
      %p75 = por %p73, %p74
      %p76 = scmp.ne.s32.totalorder %s64, %s65
      %p77 = scmp.eq.s32.totalorder %s22, 1
      %p78 = por %p76, %p77
      %p80 = scmp.ne.s32.totalorder %s65, %s79
      %p81 = scmp.eq.s32.totalorder %s22, 0
      %p82 = por %p80, %p81
      %s84 = sadd.s32 %s83, 1
      %p87 = scmp.eq.s32.totalorder %s16, 1
      %p88 = scmp.ne.s32.totalorder %s83, %s85
      %p89 = scmp.eq.s32.totalorder %s16, 0
      %p90 = por %p88, %p89
      %p91 = scmp.ne.s32.totalorder %s83, %s85
      %p92 = scmp.eq.s32.totalorder %s21, 1
      %p93 = por %p91, %p92
      %p94 = scmp.ne.s32.totalorder %s85, %s86
      %p95 = scmp.eq.s32.totalorder %s21, 0
      %p96 = por %p94, %p95
      %p97 = scmp.ne.s32.totalorder %s85, %s86
      %p98 = scmp.eq.s32.totalorder %s22, 1
      %p99 = por %p97, %p98
      %p101 = scmp.ne.s32.totalorder %s86, %s100
      %p102 = scmp.eq.s32.totalorder %s22, 0
      %p103 = por %p101, %p102
      %s104 = ssub.s32 %s23, %s35
      %s105 = ssub.s32 %s24, %s31
      %s106 = sor.u32 %s104, %s105
      %p107 = scmp.eq.s32.totalorder %s106, 0
      %s109 = sadd.s32 %s108, 1
      %s110 = scalar_select %p107, %s108, %s109
      %p113 = pneg %p107
      %p114 = scmp.eq.s32.totalorder %s16, 1
      %p115 = por %p113, %p114
      %p116 = scmp.ne.s32.totalorder %s108, %s111
      %p117 = scmp.eq.s32.totalorder %s16, 0
      %p118 = por %p116, %p117
      %p119 = scmp.ne.s32.totalorder %s108, %s111
      %p120 = scmp.eq.s32.totalorder %s21, 1
      %p121 = por %p119, %p120
      %p122 = scmp.ne.s32.totalorder %s111, %s112
      %p123 = scmp.eq.s32.totalorder %s21, 0
      %p124 = por %p122, %p123
      %p125 = scmp.ne.s32.totalorder %s111, %s112
      %p126 = scmp.eq.s32.totalorder %s22, 1
      %p127 = por %p125, %p126
      %p129 = scmp.ne.s32.totalorder %s112, %s128
      %p130 = scmp.eq.s32.totalorder %s22, 0
      %p131 = por %p129, %p130
      %p132 = scmp.le.s32.totalorder 1, %s16
      %p133 = scmp.lt.s32.totalorder %s16, 3
      %p134 = pnand %p132, %p133
      %p135 = pneg %p134
      // Predicated region
      $region9: #{tpu_custom_call.1} parent=5 // pred_check
        _
      $region10: #{tpu_custom_call.1} parent=5 // pred_check_branch
        %137 = sbr.rel (%p134) target = $region12
      $region11: #{tpu_custom_call.1} parent=5 // pred_region
        %s138 = ssub.s32 %s16, 1
        // Predicated region
        $region13: #{tpu_custom_call.1} parent=11 // pred_check
          %p139 = pneg %p75
        $region14: #{tpu_custom_call.1} parent=11 // pred_check_branch
          %141 = sbr.rel (%p139) target = $region16
        $region15: #{tpu_custom_call.1} parent=11 // pred_region
          %143 = vsyncadd [#allocation6], 0
          %s144 = sshll.u32 %s1, 4
          %s145 = int_to_ptr.hbm [resolvable:$true] %s144
          %s146 = sshll.u32 [#allocation5], 4
          %s147 = int_to_ptr.vmem [resolvable:$true] %s146
          %152 = dma.hbm_to_vmem [thread:$0]  %s145, 9216, %s147, [#allocation6], 64, 64, 4
        $region16: #{tpu_custom_call.1} parent=11 // pred_fallthru
          _
        // Predicated region
        $region17: #{tpu_custom_call.1} parent=11 // pred_check
          %p153 = pneg %p96
        $region18: #{tpu_custom_call.1} parent=11 // pred_check_branch
          %155 = sbr.rel (%p153) target = $region20
        $region19: #{tpu_custom_call.1} parent=11 // pred_region
          _
        $region20: #{tpu_custom_call.1} parent=11 // pred_fallthru
          _
      $region12: #{tpu_custom_call.1} parent=5 // pred_fallthru
        _
      %p156 = scmp.lt.s32.totalorder %s16, 2
      // Predicated region
      $region21: #{tpu_custom_call.1} parent=5 // pred_check
        %p157 = pneg %p156
      $region22: #{tpu_custom_call.1} parent=5 // pred_check_branch
        %159 = sbr.rel (%p157) target = $region24
      $region23: #{tpu_custom_call.1} parent=5 // pred_region
        // Predicated region
        $region25: #{tpu_custom_call.1} parent=23 // pred_check
          %p160 = pneg %p48
        $region26: #{tpu_custom_call.1} parent=23 // pred_check_branch
          %162 = sbr.rel (%p160) target = $region28
        $region27: #{tpu_custom_call.1} parent=23 // pred_region
          %s163 = sand.u32 %s38, 1
          %s164 = scalar_lea.sflag [#allocation3], %s163
          %s165 = sand.u32 %s38, 1
          %s166 = smul.addr %s165, 216
          %s167 = scalar_lea.vmem [#allocation2], %s166
          %169 = vsyncadd %s164, 0
          %s170 = smul.addr %s23, 54
          %s171 = smul.addr %s170, 4
          %s172 = scalar_lea.hbm %s0, %s171
          %s173 = sshll.u32 %s172, 4
          %s174 = int_to_ptr.hbm [resolvable:$true] %s173
          %s175 = sshll.u32 %s167, 4
          %s176 = int_to_ptr.vmem [resolvable:$true] %s175
          %181 = dma.hbm_to_vmem [thread:$0]  %s174, 3456, %s176, %s164, 64, 64, 4
        $region28: #{tpu_custom_call.1} parent=23 // pred_fallthru
          _
      $region24: #{tpu_custom_call.1} parent=5 // pred_fallthru
        _
      %p182 = scmp.le.s32.totalorder 1, %s16
      %p183 = scmp.lt.s32.totalorder %s16, 3
      %p184 = pnand %p182, %p183
      %p185 = pneg %p184
      // Predicated region
      $region29: #{tpu_custom_call.1} parent=5 // pred_check
        _
      $region30: #{tpu_custom_call.1} parent=5 // pred_check_branch
        %187 = sbr.rel (%p184) target = $region32
      $region31: #{tpu_custom_call.1} parent=5 // pred_region
        %s188 = ssub.s32 %s16, 1
        %s189 = sand.u32 %s41, 1
        %s190 = scalar_lea.sflag [#allocation3], %s189
        %s191 = sand.u32 %s41, 1
        %s192 = smul.addr %s191, 216
        %s193 = scalar_lea.vmem [#allocation2], %s192
        // Predicated region
        $region33: #{tpu_custom_call.1} parent=31 // pred_check
          %p194 = pneg %p54
        $region34: #{tpu_custom_call.1} parent=31 // pred_check_branch
          %196 = sbr.rel (%p194) target = $region36
        $region35: #{tpu_custom_call.1} parent=31 // pred_region
          %198 = dma.done %s190, 3456
        $region36: #{tpu_custom_call.1} parent=31 // pred_fallthru
          _
        // Predicated region
        $region37: #{tpu_custom_call.1} parent=31 // pred_check
          %p199 = pneg %p75
        $region38: #{tpu_custom_call.1} parent=31 // pred_check_branch
          %201 = sbr.rel (%p199) target = $region40
        $region39: #{tpu_custom_call.1} parent=31 // pred_region
          %203 = dma.done [#allocation6], 9216
        $region40: #{tpu_custom_call.1} parent=31 // pred_fallthru
          _
        %s204 = sand.u32 %s41, 1
        %s205 = scalar_lea.sflag [#allocation3], %s204
        %s206 = sand.u32 %s41, 1
        %s207 = smul.addr %s206, 216
        %s208 = scalar_lea.vmem [#allocation2], %s207
        %p209 = pneg %p54
        %p210 = pneg %p51
        %p211 = pneg %p75
        %p212 = pneg %p72
        %p213 = pneg %p96
        %p214 = pneg %p93
        %p215 = pneg %p124
        %p216 = pneg %p121
        %s217 = sand.u32 %s111, 1
        %s218 = scalar_lea.sflag [#allocation4], %s217
        %s219 = sand.u32 %s111, 1
        %s220 = smul.addr %s219, 128
        %s221 = scalar_lea.vmem [#allocation7], %s220
        %s222 = smul.u32 16, %s26
        %s223 = smul.u32 %s26, 16
        %s224 = smul.u32 %s223, 3
        %s225 = smul.addr %s224, 4
        %s226 = scalar_lea.vmem %s193, %s225 [#allocation2]
        %v227 = vld [vmem:[%s226] sm:$0xf]
        %v228 = vld [vmem:[%s226 + $0x4] sm:$0xf]
        %v229 = vld [vmem:[%s226 + $0xc] sm:$0xf]
        %v230 = vld [vmem:[%s226 + $0x10] sm:$0xf]
        %v231 = vld [vmem:[%s226 + $0x18] sm:$0xf]
        %v232 = vld [vmem:[%s226 + $0x1c] sm:$0xf]
        %v233 = vld [vmem:[%s226 + $0x24] sm:$0xf]
        %v234 = vld [vmem:[%s226 + $0x28] sm:$0xf]
        %v235 = vld [vmem:[%s226 + $0x30] sm:$0xf]
        %v236 = vld [vmem:[%s226 + $0x34] sm:$0xf]
        %v237 = vld [vmem:[%s226 + $0x3c] sm:$0xf]
        %v238 = vld [vmem:[%s226 + $0x40] sm:$0xf]
        %v239 = vld [vmem:[%s226 + $0x48] sm:$0xf]
        %v240 = vld [vmem:[%s226 + $0x4c] sm:$0xf]
        %v241 = vld [vmem:[%s226 + $0x54] sm:$0xf]
        %v242 = vld [vmem:[%s226 + $0x58] sm:$0xf]
        %v243 = vld [vmem:[%s226 + $0x60] sm:$0xf]
        %v244 = vld [vmem:[%s226 + $0x64] sm:$0xf]
        %v245 = vld [vmem:[%s226 + $0x6c] sm:$0xf]
        %v246 = vld [vmem:[%s226 + $0x70] sm:$0xf]
        %v247 = vld [vmem:[%s226 + $0x78] sm:$0xf]
        %v248 = vld [vmem:[%s226 + $0x7c] sm:$0xf]
        %v249 = vld [vmem:[%s226 + $0x84] sm:$0xf]
        %v250 = vld [vmem:[%s226 + $0x88] sm:$0xf]
        %v251 = vld [vmem:[%s226 + $0x90] sm:$0xf]
        %v252 = vld [vmem:[%s226 + $0x94] sm:$0xf]
        %v253 = vld [vmem:[%s226 + $0x9c] sm:$0xf]
        %v254 = vld [vmem:[%s226 + $0xa0] sm:$0xf]
        %v255 = vld [vmem:[%s226 + $0xa8] sm:$0xf]
        %v256 = vld [vmem:[%s226 + $0xac] sm:$0xf]
        %v257 = vld [vmem:[%s226 + $0xb4] sm:$0xf]
        %v258 = vld [vmem:[%s226 + $0xb8] sm:$0xf]
        %v259 = vld [vmem:[%s226 + $0x8] sm:$0x1]
        %v260 = vld [vmem:[%s226 + $0x14] sm:$0x1]
        %v261 = vld [vmem:[%s226 + $0x20] sm:$0x1]
        %v262 = vld [vmem:[%s226 + $0x2c] sm:$0x1]
        %v263 = vld [vmem:[%s226 + $0x38] sm:$0x1]
        %v264 = vld [vmem:[%s226 + $0x44] sm:$0x1]
        %v265 = vld [vmem:[%s226 + $0x50] sm:$0x1]
        %v266 = vld [vmem:[%s226 + $0x5c] sm:$0x1]
        %v267 = vld [vmem:[%s226 + $0x68] sm:$0x1]
        %v268 = vld [vmem:[%s226 + $0x74] sm:$0x1]
        %v269 = vld [vmem:[%s226 + $0x80] sm:$0x1]
        %v270 = vld [vmem:[%s226 + $0x8c] sm:$0x1]
        %v271 = vld [vmem:[%s226 + $0x98] sm:$0x1]
        %v272 = vld [vmem:[%s226 + $0xa4] sm:$0x1]
        %v273 = vld [vmem:[%s226 + $0xb0] sm:$0x1]
        %v274 = vld [vmem:[%s226 + $0xbc] sm:$0x1]
        %v275 = vld [vmem:[%s226] sm:$0xe]
        %v276 = vld [vmem:[%s226 + $0xc] sm:$0xe]
        %v277 = vld [vmem:[%s226 + $0x18] sm:$0xe]
        %v278 = vld [vmem:[%s226 + $0x24] sm:$0xe]
        %v279 = vld [vmem:[%s226 + $0x30] sm:$0xe]
        %v280 = vld [vmem:[%s226 + $0x3c] sm:$0xe]
        %v281 = vld [vmem:[%s226 + $0x48] sm:$0xe]
        %v282 = vld [vmem:[%s226 + $0x54] sm:$0xe]
        %v283 = vld [vmem:[%s226 + $0x60] sm:$0xe]
        %v284 = vld [vmem:[%s226 + $0x6c] sm:$0xe]
        %v285 = vld [vmem:[%s226 + $0x78] sm:$0xe]
        %v286 = vld [vmem:[%s226 + $0x84] sm:$0xe]
        %v287 = vld [vmem:[%s226 + $0x90] sm:$0xe]
        %v288 = vld [vmem:[%s226 + $0x9c] sm:$0xe]
        %v289 = vld [vmem:[%s226 + $0xa8] sm:$0xe]
        %v290 = vld [vmem:[%s226 + $0xb4] sm:$0xe]
        %v323 = vunpack.c.l.b16 %v227
        %v324 = vunpack.c.l.b16 %v228
        %v325 = vunpack.c.l.b16 %v229
        %v326 = vunpack.c.l.b16 %v230
        %v327 = vunpack.c.l.b16 %v231
        %v328 = vunpack.c.l.b16 %v232
        %v329 = vunpack.c.l.b16 %v233
        %v330 = vunpack.c.l.b16 %v234
        %v331 = vunpack.c.l.b16 %v235
        %v332 = vunpack.c.l.b16 %v236
        %v333 = vunpack.c.l.b16 %v237
        %v334 = vunpack.c.l.b16 %v238
        %v335 = vunpack.c.l.b16 %v239
        %v336 = vunpack.c.l.b16 %v240
        %v337 = vunpack.c.l.b16 %v241
        %v338 = vunpack.c.l.b16 %v242
        %v339 = vunpack.c.l.b16 %v243
        %v340 = vunpack.c.l.b16 %v244
        %v341 = vunpack.c.l.b16 %v245
        %v342 = vunpack.c.l.b16 %v246
        %v343 = vunpack.c.l.b16 %v247
        %v344 = vunpack.c.l.b16 %v248
        %v345 = vunpack.c.l.b16 %v249
        %v346 = vunpack.c.l.b16 %v250
        %v347 = vunpack.c.l.b16 %v251
        %v348 = vunpack.c.l.b16 %v252
        %v349 = vunpack.c.l.b16 %v253
        %v350 = vunpack.c.l.b16 %v254
        %v351 = vunpack.c.l.b16 %v255
        %v352 = vunpack.c.l.b16 %v256
        %v353 = vunpack.c.l.b16 %v257
        %v354 = vunpack.c.l.b16 %v258
        %v355 = vpack.c.b16 %v324, %v323
        %v356 = vpack.c.b16 %v326, %v325
        %v357 = vpack.c.b16 %v328, %v327
        %v358 = vpack.c.b16 %v330, %v329
        %v359 = vpack.c.b16 %v332, %v331
        %v360 = vpack.c.b16 %v334, %v333
        %v361 = vpack.c.b16 %v336, %v335
        %v362 = vpack.c.b16 %v338, %v337
        %v363 = vpack.c.b16 %v340, %v339
        %v364 = vpack.c.b16 %v342, %v341
        %v365 = vpack.c.b16 %v344, %v343
        %v366 = vpack.c.b16 %v346, %v345
        %v367 = vpack.c.b16 %v348, %v347
        %v368 = vpack.c.b16 %v350, %v349
        %v369 = vpack.c.b16 %v352, %v351
        %v370 = vpack.c.b16 %v354, %v353
        %v403 = vunpack.c.l.b16 %v259
        %v404 = vunpack.c.l.b16 %v260
        %v405 = vunpack.c.l.b16 %v261
        %v406 = vunpack.c.l.b16 %v262
        %v407 = vunpack.c.l.b16 %v263
        %v408 = vunpack.c.l.b16 %v264
        %v409 = vunpack.c.l.b16 %v265
        %v410 = vunpack.c.l.b16 %v266
        %v411 = vunpack.c.l.b16 %v267
        %v412 = vunpack.c.l.b16 %v268
        %v413 = vunpack.c.l.b16 %v269
        %v414 = vunpack.c.l.b16 %v270
        %v415 = vunpack.c.l.b16 %v271
        %v416 = vunpack.c.l.b16 %v272
        %v417 = vunpack.c.l.b16 %v273
        %v418 = vunpack.c.l.b16 %v274
        %v419 = vpack.c.b16 %v403, %v403
        %v420 = vpack.c.b16 %v404, %v404
        %v421 = vpack.c.b16 %v405, %v405
        %v422 = vpack.c.b16 %v406, %v406
        %v423 = vpack.c.b16 %v407, %v407
        %v424 = vpack.c.b16 %v408, %v408
        %v425 = vpack.c.b16 %v409, %v409
        %v426 = vpack.c.b16 %v410, %v410
        %v427 = vpack.c.b16 %v411, %v411
        %v428 = vpack.c.b16 %v412, %v412
        %v429 = vpack.c.b16 %v413, %v413
        %v430 = vpack.c.b16 %v414, %v414
        %v431 = vpack.c.b16 %v415, %v415
        %v432 = vpack.c.b16 %v416, %v416
        %v433 = vpack.c.b16 %v417, %v417
        %v434 = vpack.c.b16 %v418, %v418
        %vm435 = vsmask.f32 7424
        %v437 = vshrl.u32 %v355, 16
        %v439 = vshll.u32 %v355, 16
        %v441 = vrot.slane %v439, 1
        %v442 = vor.u32 %v437, %v441
        %v444 = vshll.u32 %v419, 16
        %v446 = vrot.slane %v444, 1
        %v447 = vsel %vm435, %v442, %v446
        %v449 = vshrl.u32 %v356, 16
        %v451 = vshll.u32 %v356, 16
        %v453 = vrot.slane %v451, 1
        %v454 = vor.u32 %v449, %v453
        %v456 = vshll.u32 %v420, 16
        %v458 = vrot.slane %v456, 1
        %v459 = vsel %vm435, %v454, %v458
        %v461 = vshrl.u32 %v357, 16
        %v463 = vshll.u32 %v357, 16
        %v465 = vrot.slane %v463, 1
        %v466 = vor.u32 %v461, %v465
        %v468 = vshll.u32 %v421, 16
        %v470 = vrot.slane %v468, 1
        %v471 = vsel %vm435, %v466, %v470
        %v473 = vshrl.u32 %v358, 16
        %v475 = vshll.u32 %v358, 16
        %v477 = vrot.slane %v475, 1
        %v478 = vor.u32 %v473, %v477
        %v480 = vshll.u32 %v422, 16
        %v482 = vrot.slane %v480, 1
        %v483 = vsel %vm435, %v478, %v482
        %v485 = vshrl.u32 %v359, 16
        %v487 = vshll.u32 %v359, 16
        %v489 = vrot.slane %v487, 1
        %v490 = vor.u32 %v485, %v489
        %v492 = vshll.u32 %v423, 16
        %v494 = vrot.slane %v492, 1
        %v495 = vsel %vm435, %v490, %v494
        %v497 = vshrl.u32 %v360, 16
        %v499 = vshll.u32 %v360, 16
        %v501 = vrot.slane %v499, 1
        %v502 = vor.u32 %v497, %v501
        %v504 = vshll.u32 %v424, 16
        %v506 = vrot.slane %v504, 1
        %v507 = vsel %vm435, %v502, %v506
        %v509 = vshrl.u32 %v361, 16
        %v511 = vshll.u32 %v361, 16
        %v513 = vrot.slane %v511, 1
        %v514 = vor.u32 %v509, %v513
        %v516 = vshll.u32 %v425, 16
        %v518 = vrot.slane %v516, 1
        %v519 = vsel %vm435, %v514, %v518
        %v521 = vshrl.u32 %v362, 16
        %v523 = vshll.u32 %v362, 16
        %v525 = vrot.slane %v523, 1
        %v526 = vor.u32 %v521, %v525
        %v528 = vshll.u32 %v426, 16
        %v530 = vrot.slane %v528, 1
        %v531 = vsel %vm435, %v526, %v530
        %v533 = vshrl.u32 %v363, 16
        %v535 = vshll.u32 %v363, 16
        %v537 = vrot.slane %v535, 1
        %v538 = vor.u32 %v533, %v537
        %v540 = vshll.u32 %v427, 16
        %v542 = vrot.slane %v540, 1
        %v543 = vsel %vm435, %v538, %v542
        %v545 = vshrl.u32 %v364, 16
        %v547 = vshll.u32 %v364, 16
        %v549 = vrot.slane %v547, 1
        %v550 = vor.u32 %v545, %v549
        %v552 = vshll.u32 %v428, 16
        %v554 = vrot.slane %v552, 1
        %v555 = vsel %vm435, %v550, %v554
        %v557 = vshrl.u32 %v365, 16
        %v559 = vshll.u32 %v365, 16
        %v561 = vrot.slane %v559, 1
        %v562 = vor.u32 %v557, %v561
        %v564 = vshll.u32 %v429, 16
        %v566 = vrot.slane %v564, 1
        %v567 = vsel %vm435, %v562, %v566
        %v569 = vshrl.u32 %v366, 16
        %v571 = vshll.u32 %v366, 16
        %v573 = vrot.slane %v571, 1
        %v574 = vor.u32 %v569, %v573
        %v576 = vshll.u32 %v430, 16
        %v578 = vrot.slane %v576, 1
        %v579 = vsel %vm435, %v574, %v578
        %v581 = vshrl.u32 %v367, 16
        %v583 = vshll.u32 %v367, 16
        %v585 = vrot.slane %v583, 1
        %v586 = vor.u32 %v581, %v585
        %v588 = vshll.u32 %v431, 16
        %v590 = vrot.slane %v588, 1
        %v591 = vsel %vm435, %v586, %v590
        %v593 = vshrl.u32 %v368, 16
        %v595 = vshll.u32 %v368, 16
        %v597 = vrot.slane %v595, 1
        %v598 = vor.u32 %v593, %v597
        %v600 = vshll.u32 %v432, 16
        %v602 = vrot.slane %v600, 1
        %v603 = vsel %vm435, %v598, %v602
        %v605 = vshrl.u32 %v369, 16
        %v607 = vshll.u32 %v369, 16
        %v609 = vrot.slane %v607, 1
        %v610 = vor.u32 %v605, %v609
        %v612 = vshll.u32 %v433, 16
        %v614 = vrot.slane %v612, 1
        %v615 = vsel %vm435, %v610, %v614
        %v617 = vshrl.u32 %v370, 16
        %v619 = vshll.u32 %v370, 16
        %v621 = vrot.slane %v619, 1
        %v622 = vor.u32 %v617, %v621
        %v624 = vshll.u32 %v434, 16
        %v626 = vrot.slane %v624, 1
        %v627 = vsel %vm435, %v622, %v626
        %v660 = vunpack.c.l.b16 %v275
        %v661 = vunpack.c.l.b16 %v276
        %v662 = vunpack.c.l.b16 %v277
        %v663 = vunpack.c.l.b16 %v278
        %v664 = vunpack.c.l.b16 %v279
        %v665 = vunpack.c.l.b16 %v280
        %v666 = vunpack.c.l.b16 %v281
        %v667 = vunpack.c.l.b16 %v282
        %v668 = vunpack.c.l.b16 %v283
        %v669 = vunpack.c.l.b16 %v284
        %v670 = vunpack.c.l.b16 %v285
        %v671 = vunpack.c.l.b16 %v286
        %v672 = vunpack.c.l.b16 %v287
        %v673 = vunpack.c.l.b16 %v288
        %v674 = vunpack.c.l.b16 %v289
        %v675 = vunpack.c.l.b16 %v290
        %v676 = vpack.c.b16 %v324, %v660
        %v677 = vpack.c.b16 %v326, %v661
        %v678 = vpack.c.b16 %v328, %v662
        %v679 = vpack.c.b16 %v330, %v663
        %v680 = vpack.c.b16 %v332, %v664
        %v681 = vpack.c.b16 %v334, %v665
        %v682 = vpack.c.b16 %v336, %v666
        %v683 = vpack.c.b16 %v338, %v667
        %v684 = vpack.c.b16 %v340, %v668
        %v685 = vpack.c.b16 %v342, %v669
        %v686 = vpack.c.b16 %v344, %v670
        %v687 = vpack.c.b16 %v346, %v671
        %v688 = vpack.c.b16 %v348, %v672
        %v689 = vpack.c.b16 %v350, %v673
        %v690 = vpack.c.b16 %v352, %v674
        %v691 = vpack.c.b16 %v354, %v675
        %vm692 = vcmask 1046528
        %v693 = vrot.slane %v676, 1
        %v694 = vrot.slane %v419, 1
        %v695 = vsel %vm692, %v693, %v694
        %v696 = vrot.slane %v677, 1
        %v697 = vrot.slane %v420, 1
        %v698 = vsel %vm692, %v696, %v697
        %v699 = vrot.slane %v678, 1
        %v700 = vrot.slane %v421, 1
        %v701 = vsel %vm692, %v699, %v700
        %v702 = vrot.slane %v679, 1
        %v703 = vrot.slane %v422, 1
        %v704 = vsel %vm692, %v702, %v703
        %v705 = vrot.slane %v680, 1
        %v706 = vrot.slane %v423, 1
        %v707 = vsel %vm692, %v705, %v706
        %v708 = vrot.slane %v681, 1
        %v709 = vrot.slane %v424, 1
        %v710 = vsel %vm692, %v708, %v709
        %v711 = vrot.slane %v682, 1
        %v712 = vrot.slane %v425, 1
        %v713 = vsel %vm692, %v711, %v712
        %v714 = vrot.slane %v683, 1
        %v715 = vrot.slane %v426, 1
        %v716 = vsel %vm692, %v714, %v715
        %v717 = vrot.slane %v684, 1
        %v718 = vrot.slane %v427, 1
        %v719 = vsel %vm692, %v717, %v718
        %v720 = vrot.slane %v685, 1
        %v721 = vrot.slane %v428, 1
        %v722 = vsel %vm692, %v720, %v721
        %v723 = vrot.slane %v686, 1
        %v724 = vrot.slane %v429, 1
        %v725 = vsel %vm692, %v723, %v724
        %v726 = vrot.slane %v687, 1
        %v727 = vrot.slane %v430, 1
        %v728 = vsel %vm692, %v726, %v727
        %v729 = vrot.slane %v688, 1
        %v730 = vrot.slane %v431, 1
        %v731 = vsel %vm692, %v729, %v730
        %v732 = vrot.slane %v689, 1
        %v733 = vrot.slane %v432, 1
        %v734 = vsel %vm692, %v732, %v733
        %v735 = vrot.slane %v690, 1
        %v736 = vrot.slane %v433, 1
        %v737 = vsel %vm692, %v735, %v736
        %v738 = vrot.slane %v691, 1
        %v739 = vrot.slane %v434, 1
        %v740 = vsel %vm692, %v738, %v739
        %v757 = vld [vmem:[#allocation5] sm:$0xf]
        %v758 = vld [vmem:[#allocation5 + $0x4] sm:$0xf]
        %v759 = vld [vmem:[#allocation5 + $0x8] sm:$0xf]
        %v760 = vld [vmem:[#allocation5 + $0xc] sm:$0xf]
        %v761 = vld [vmem:[#allocation5 + $0x10] sm:$0xf]
        %v762 = vld [vmem:[#allocation5 + $0x14] sm:$0xf]
        %v763 = vld [vmem:[#allocation5 + $0x18] sm:$0xf]
        %v764 = vld [vmem:[#allocation5 + $0x1c] sm:$0xf]
        %v765 = vld [vmem:[#allocation5 + $0x20] sm:$0xf]
        %v766 = vld [vmem:[#allocation5 + $0x24] sm:$0xf]
        %v767 = vld [vmem:[#allocation5 + $0x28] sm:$0xf]
        %v768 = vld [vmem:[#allocation5 + $0x2c] sm:$0xf]
        %v769 = vld [vmem:[#allocation5 + $0x30] sm:$0xf]
        %v770 = vld [vmem:[#allocation5 + $0x34] sm:$0xf]
        %v771 = vld [vmem:[#allocation5 + $0x38] sm:$0xf]
        %v772 = vld [vmem:[#allocation5 + $0x3c] sm:$0xf]
        %v773 = vld [vmem:[#allocation5 + $0x40] sm:$0xf]
        %v774 = vld [vmem:[#allocation5 + $0x44] sm:$0xf]
        %v775 = vld [vmem:[#allocation5 + $0x48] sm:$0xf]
        %v776 = vld [vmem:[#allocation5 + $0x4c] sm:$0xf]
        %v777 = vld [vmem:[#allocation5 + $0x50] sm:$0xf]
        %v778 = vld [vmem:[#allocation5 + $0x54] sm:$0xf]
        %v779 = vld [vmem:[#allocation5 + $0x58] sm:$0xf]
        %v780 = vld [vmem:[#allocation5 + $0x5c] sm:$0xf]
        %v781 = vld [vmem:[#allocation5 + $0x60] sm:$0xf]
        %v782 = vld [vmem:[#allocation5 + $0x64] sm:$0xf]
        %v783 = vld [vmem:[#allocation5 + $0x68] sm:$0xf]
        %v784 = vld [vmem:[#allocation5 + $0x6c] sm:$0xf]
        %v785 = vld [vmem:[#allocation5 + $0x70] sm:$0xf]
        %v786 = vld [vmem:[#allocation5 + $0x74] sm:$0xf]
        %v787 = vld [vmem:[#allocation5 + $0x78] sm:$0xf]
        %v788 = vld [vmem:[#allocation5 + $0x7c] sm:$0xf]
        %v789 = vld [vmem:[#allocation5 + $0x80] sm:$0xf]
        %v790 = vld [vmem:[#allocation5 + $0x84] sm:$0xf]
        %v791 = vld [vmem:[#allocation5 + $0x88] sm:$0xf]
        %v792 = vld [vmem:[#allocation5 + $0x8c] sm:$0xf]
        %v793 = vld [vmem:[#allocation5 + $0x90] sm:$0xf]
        %v794 = vld [vmem:[#allocation5 + $0x94] sm:$0xf]
        %v795 = vld [vmem:[#allocation5 + $0x98] sm:$0xf]
        %v796 = vld [vmem:[#allocation5 + $0x9c] sm:$0xf]
        %v797 = vld [vmem:[#allocation5 + $0xa0] sm:$0xf]
        %v798 = vld [vmem:[#allocation5 + $0xa4] sm:$0xf]
        %v799 = vld [vmem:[#allocation5 + $0xa8] sm:$0xf]
        %v800 = vld [vmem:[#allocation5 + $0xac] sm:$0xf]
        %v801 = vld [vmem:[#allocation5 + $0xb0] sm:$0xf]
        %v802 = vld [vmem:[#allocation5 + $0xb4] sm:$0xf]
        %v803 = vld [vmem:[#allocation5 + $0xb8] sm:$0xf]
        %v804 = vld [vmem:[#allocation5 + $0xbc] sm:$0xf]
        %s805 = sadd.s32 %s223, 1
        %s806 = smul.u32 %s805, 3
        %s807 = smul.addr %s806, 4
        %s808 = scalar_lea.vmem %s193, %s807 [#allocation2]
        %v809 = vld [vmem:[%s808] sm:$0xf]
        %v810 = vld [vmem:[%s808 + $0x4] sm:$0xf]
        %v811 = vld [vmem:[%s808 + $0xc] sm:$0xf]
        %v812 = vld [vmem:[%s808 + $0x10] sm:$0xf]
        %v813 = vld [vmem:[%s808 + $0x18] sm:$0xf]
        %v814 = vld [vmem:[%s808 + $0x1c] sm:$0xf]
        %v815 = vld [vmem:[%s808 + $0x24] sm:$0xf]
        %v816 = vld [vmem:[%s808 + $0x28] sm:$0xf]
        %v817 = vld [vmem:[%s808 + $0x30] sm:$0xf]
        %v818 = vld [vmem:[%s808 + $0x34] sm:$0xf]
        %v819 = vld [vmem:[%s808 + $0x3c] sm:$0xf]
        %v820 = vld [vmem:[%s808 + $0x40] sm:$0xf]
        %v821 = vld [vmem:[%s808 + $0x48] sm:$0xf]
        %v822 = vld [vmem:[%s808 + $0x4c] sm:$0xf]
        %v823 = vld [vmem:[%s808 + $0x54] sm:$0xf]
        %v824 = vld [vmem:[%s808 + $0x58] sm:$0xf]
        %v825 = vld [vmem:[%s808 + $0x60] sm:$0xf]
        %v826 = vld [vmem:[%s808 + $0x64] sm:$0xf]
        %v827 = vld [vmem:[%s808 + $0x6c] sm:$0xf]
        %v828 = vld [vmem:[%s808 + $0x70] sm:$0xf]
        %v829 = vld [vmem:[%s808 + $0x78] sm:$0xf]
        %v830 = vld [vmem:[%s808 + $0x7c] sm:$0xf]
        %v831 = vld [vmem:[%s808 + $0x84] sm:$0xf]
        %v832 = vld [vmem:[%s808 + $0x88] sm:$0xf]
        %v833 = vld [vmem:[%s808 + $0x90] sm:$0xf]
        %v834 = vld [vmem:[%s808 + $0x94] sm:$0xf]
        %v835 = vld [vmem:[%s808 + $0x9c] sm:$0xf]
        %v836 = vld [vmem:[%s808 + $0xa0] sm:$0xf]
        %v837 = vld [vmem:[%s808 + $0xa8] sm:$0xf]
        %v838 = vld [vmem:[%s808 + $0xac] sm:$0xf]
        %v839 = vld [vmem:[%s808 + $0xb4] sm:$0xf]
        %v840 = vld [vmem:[%s808 + $0xb8] sm:$0xf]
        %v841 = vld [vmem:[%s808 + $0x8] sm:$0x1]
        %v842 = vld [vmem:[%s808 + $0x14] sm:$0x1]
        %v843 = vld [vmem:[%s808 + $0x20] sm:$0x1]
        %v844 = vld [vmem:[%s808 + $0x2c] sm:$0x1]
        %v845 = vld [vmem:[%s808 + $0x38] sm:$0x1]
        %v846 = vld [vmem:[%s808 + $0x44] sm:$0x1]
        %v847 = vld [vmem:[%s808 + $0x50] sm:$0x1]
        %v848 = vld [vmem:[%s808 + $0x5c] sm:$0x1]
        %v849 = vld [vmem:[%s808 + $0x68] sm:$0x1]
        %v850 = vld [vmem:[%s808 + $0x74] sm:$0x1]
        %v851 = vld [vmem:[%s808 + $0x80] sm:$0x1]
        %v852 = vld [vmem:[%s808 + $0x8c] sm:$0x1]
        %v853 = vld [vmem:[%s808 + $0x98] sm:$0x1]
        %v854 = vld [vmem:[%s808 + $0xa4] sm:$0x1]
        %v855 = vld [vmem:[%s808 + $0xb0] sm:$0x1]
        %v856 = vld [vmem:[%s808 + $0xbc] sm:$0x1]
        %v857 = vld [vmem:[%s808] sm:$0xe]
        %v858 = vld [vmem:[%s808 + $0xc] sm:$0xe]
        %v859 = vld [vmem:[%s808 + $0x18] sm:$0xe]
        %v860 = vld [vmem:[%s808 + $0x24] sm:$0xe]
        %v861 = vld [vmem:[%s808 + $0x30] sm:$0xe]
        %v862 = vld [vmem:[%s808 + $0x3c] sm:$0xe]
        %v863 = vld [vmem:[%s808 + $0x48] sm:$0xe]
        %v864 = vld [vmem:[%s808 + $0x54] sm:$0xe]
        %v865 = vld [vmem:[%s808 + $0x60] sm:$0xe]
        %v866 = vld [vmem:[%s808 + $0x6c] sm:$0xe]
        %v867 = vld [vmem:[%s808 + $0x78] sm:$0xe]
        %v868 = vld [vmem:[%s808 + $0x84] sm:$0xe]
        %v869 = vld [vmem:[%s808 + $0x90] sm:$0xe]
        %v870 = vld [vmem:[%s808 + $0x9c] sm:$0xe]
        %v871 = vld [vmem:[%s808 + $0xa8] sm:$0xe]
        %v872 = vld [vmem:[%s808 + $0xb4] sm:$0xe]
        %v905 = vunpack.c.l.b16 %v809
        %v906 = vunpack.c.l.b16 %v810
        %v907 = vunpack.c.l.b16 %v811
        %v908 = vunpack.c.l.b16 %v812
        %v909 = vunpack.c.l.b16 %v813
        %v910 = vunpack.c.l.b16 %v814
        %v911 = vunpack.c.l.b16 %v815
        %v912 = vunpack.c.l.b16 %v816
        %v913 = vunpack.c.l.b16 %v817
        %v914 = vunpack.c.l.b16 %v818
        %v915 = vunpack.c.l.b16 %v819
        %v916 = vunpack.c.l.b16 %v820
        %v917 = vunpack.c.l.b16 %v821
        %v918 = vunpack.c.l.b16 %v822
        %v919 = vunpack.c.l.b16 %v823
        %v920 = vunpack.c.l.b16 %v824
        %v921 = vunpack.c.l.b16 %v825
        %v922 = vunpack.c.l.b16 %v826
        %v923 = vunpack.c.l.b16 %v827
        %v924 = vunpack.c.l.b16 %v828
        %v925 = vunpack.c.l.b16 %v829
        %v926 = vunpack.c.l.b16 %v830
        %v927 = vunpack.c.l.b16 %v831
        %v928 = vunpack.c.l.b16 %v832
        %v929 = vunpack.c.l.b16 %v833
        %v930 = vunpack.c.l.b16 %v834
        %v931 = vunpack.c.l.b16 %v835
        %v932 = vunpack.c.l.b16 %v836
        %v933 = vunpack.c.l.b16 %v837
        %v934 = vunpack.c.l.b16 %v838
        %v935 = vunpack.c.l.b16 %v839
        %v936 = vunpack.c.l.b16 %v840
        %v937 = vpack.c.b16 %v906, %v905
        %v938 = vpack.c.b16 %v908, %v907
        %v939 = vpack.c.b16 %v910, %v909
        %v940 = vpack.c.b16 %v912, %v911
        %v941 = vpack.c.b16 %v914, %v913
        %v942 = vpack.c.b16 %v916, %v915
        %v943 = vpack.c.b16 %v918, %v917
        %v944 = vpack.c.b16 %v920, %v919
        %v945 = vpack.c.b16 %v922, %v921
        %v946 = vpack.c.b16 %v924, %v923
        %v947 = vpack.c.b16 %v926, %v925
        %v948 = vpack.c.b16 %v928, %v927
        %v949 = vpack.c.b16 %v930, %v929
        %v950 = vpack.c.b16 %v932, %v931
        %v951 = vpack.c.b16 %v934, %v933
        %v952 = vpack.c.b16 %v936, %v935
        %v985 = vunpack.c.l.b16 %v841
        %v986 = vunpack.c.l.b16 %v842
        %v987 = vunpack.c.l.b16 %v843
        %v988 = vunpack.c.l.b16 %v844
        %v989 = vunpack.c.l.b16 %v845
        %v990 = vunpack.c.l.b16 %v846
        %v991 = vunpack.c.l.b16 %v847
        %v992 = vunpack.c.l.b16 %v848
        %v993 = vunpack.c.l.b16 %v849
        %v994 = vunpack.c.l.b16 %v850
        %v995 = vunpack.c.l.b16 %v851
        %v996 = vunpack.c.l.b16 %v852
        %v997 = vunpack.c.l.b16 %v853
        %v998 = vunpack.c.l.b16 %v854
        %v999 = vunpack.c.l.b16 %v855
        %v1000 = vunpack.c.l.b16 %v856
        %v1001 = vpack.c.b16 %v985, %v985
        %v1002 = vpack.c.b16 %v986, %v986
        %v1003 = vpack.c.b16 %v987, %v987
        %v1004 = vpack.c.b16 %v988, %v988
        %v1005 = vpack.c.b16 %v989, %v989
        %v1006 = vpack.c.b16 %v990, %v990
        %v1007 = vpack.c.b16 %v991, %v991
        %v1008 = vpack.c.b16 %v992, %v992
        %v1009 = vpack.c.b16 %v993, %v993
        %v1010 = vpack.c.b16 %v994, %v994
        %v1011 = vpack.c.b16 %v995, %v995
        %v1012 = vpack.c.b16 %v996, %v996
        %v1013 = vpack.c.b16 %v997, %v997
        %v1014 = vpack.c.b16 %v998, %v998
        %v1015 = vpack.c.b16 %v999, %v999
        %v1016 = vpack.c.b16 %v1000, %v1000
        %v1018 = vshrl.u32 %v937, 16
        %v1020 = vshll.u32 %v937, 16
        %v1022 = vrot.slane %v1020, 1
        %v1023 = vor.u32 %v1018, %v1022
        %v1025 = vshll.u32 %v1001, 16
        %v1027 = vrot.slane %v1025, 1
        %v1028 = vsel %vm435, %v1023, %v1027
        %v1030 = vshrl.u32 %v938, 16
        %v1032 = vshll.u32 %v938, 16
        %v1034 = vrot.slane %v1032, 1
        %v1035 = vor.u32 %v1030, %v1034
        %v1037 = vshll.u32 %v1002, 16
        %v1039 = vrot.slane %v1037, 1
        %v1040 = vsel %vm435, %v1035, %v1039
        %v1042 = vshrl.u32 %v939, 16
        %v1044 = vshll.u32 %v939, 16
        %v1046 = vrot.slane %v1044, 1
        %v1047 = vor.u32 %v1042, %v1046
        %v1049 = vshll.u32 %v1003, 16
        %v1051 = vrot.slane %v1049, 1
        %v1052 = vsel %vm435, %v1047, %v1051
        %v1054 = vshrl.u32 %v940, 16
        %v1056 = vshll.u32 %v940, 16
        %v1058 = vrot.slane %v1056, 1
        %v1059 = vor.u32 %v1054, %v1058
        %v1061 = vshll.u32 %v1004, 16
        %v1063 = vrot.slane %v1061, 1
        %v1064 = vsel %vm435, %v1059, %v1063
        %v1066 = vshrl.u32 %v941, 16
        %v1068 = vshll.u32 %v941, 16
        %v1070 = vrot.slane %v1068, 1
        %v1071 = vor.u32 %v1066, %v1070
        %v1073 = vshll.u32 %v1005, 16
        %v1075 = vrot.slane %v1073, 1
        %v1076 = vsel %vm435, %v1071, %v1075
        %v1078 = vshrl.u32 %v942, 16
        %v1080 = vshll.u32 %v942, 16
        %v1082 = vrot.slane %v1080, 1
        %v1083 = vor.u32 %v1078, %v1082
        %v1085 = vshll.u32 %v1006, 16
        %v1087 = vrot.slane %v1085, 1
        %v1088 = vsel %vm435, %v1083, %v1087
        %v1090 = vshrl.u32 %v943, 16
        %v1092 = vshll.u32 %v943, 16
        %v1094 = vrot.slane %v1092, 1
        %v1095 = vor.u32 %v1090, %v1094
        %v1097 = vshll.u32 %v1007, 16
        %v1099 = vrot.slane %v1097, 1
        %v1100 = vsel %vm435, %v1095, %v1099
        %v1102 = vshrl.u32 %v944, 16
        %v1104 = vshll.u32 %v944, 16
        %v1106 = vrot.slane %v1104, 1
        %v1107 = vor.u32 %v1102, %v1106
        %v1109 = vshll.u32 %v1008, 16
        %v1111 = vrot.slane %v1109, 1
        %v1112 = vsel %vm435, %v1107, %v1111
        %v1114 = vshrl.u32 %v945, 16
        %v1116 = vshll.u32 %v945, 16
        %v1118 = vrot.slane %v1116, 1
        %v1119 = vor.u32 %v1114, %v1118
        %v1121 = vshll.u32 %v1009, 16
        %v1123 = vrot.slane %v1121, 1
        %v1124 = vsel %vm435, %v1119, %v1123
        %v1126 = vshrl.u32 %v946, 16
        %v1128 = vshll.u32 %v946, 16
        %v1130 = vrot.slane %v1128, 1
        %v1131 = vor.u32 %v1126, %v1130
        %v1133 = vshll.u32 %v1010, 16
        %v1135 = vrot.slane %v1133, 1
        %v1136 = vsel %vm435, %v1131, %v1135
        %v1138 = vshrl.u32 %v947, 16
        %v1140 = vshll.u32 %v947, 16
        %v1142 = vrot.slane %v1140, 1
        %v1143 = vor.u32 %v1138, %v1142
        %v1145 = vshll.u32 %v1011, 16
        %v1147 = vrot.slane %v1145, 1
        %v1148 = vsel %vm435, %v1143, %v1147
        %v1150 = vshrl.u32 %v948, 16
        %v1152 = vshll.u32 %v948, 16
        %v1154 = vrot.slane %v1152, 1
        %v1155 = vor.u32 %v1150, %v1154
        %v1157 = vshll.u32 %v1012, 16
        %v1159 = vrot.slane %v1157, 1
        %v1160 = vsel %vm435, %v1155, %v1159
        %v1162 = vshrl.u32 %v949, 16
        %v1164 = vshll.u32 %v949, 16
        %v1166 = vrot.slane %v1164, 1
        %v1167 = vor.u32 %v1162, %v1166
        %v1169 = vshll.u32 %v1013, 16
        %v1171 = vrot.slane %v1169, 1
        %v1172 = vsel %vm435, %v1167, %v1171
        %v1174 = vshrl.u32 %v950, 16
        %v1176 = vshll.u32 %v950, 16
        %v1178 = vrot.slane %v1176, 1
        %v1179 = vor.u32 %v1174, %v1178
        %v1181 = vshll.u32 %v1014, 16
        %v1183 = vrot.slane %v1181, 1
        %v1184 = vsel %vm435, %v1179, %v1183
        %v1186 = vshrl.u32 %v951, 16
        %v1188 = vshll.u32 %v951, 16
        %v1190 = vrot.slane %v1188, 1
        %v1191 = vor.u32 %v1186, %v1190
        %v1193 = vshll.u32 %v1015, 16
        %v1195 = vrot.slane %v1193, 1
        %v1196 = vsel %vm435, %v1191, %v1195
        %v1198 = vshrl.u32 %v952, 16
        %v1200 = vshll.u32 %v952, 16
        %v1202 = vrot.slane %v1200, 1
        %v1203 = vor.u32 %v1198, %v1202
        %v1205 = vshll.u32 %v1016, 16
        %v1207 = vrot.slane %v1205, 1
        %v1208 = vsel %vm435, %v1203, %v1207
        %v1241 = vunpack.c.l.b16 %v857
        %v1242 = vunpack.c.l.b16 %v858
        %v1243 = vunpack.c.l.b16 %v859
        %v1244 = vunpack.c.l.b16 %v860
        %v1245 = vunpack.c.l.b16 %v861
        %v1246 = vunpack.c.l.b16 %v862
        %v1247 = vunpack.c.l.b16 %v863
        %v1248 = vunpack.c.l.b16 %v864
        %v1249 = vunpack.c.l.b16 %v865
        %v1250 = vunpack.c.l.b16 %v866
        %v1251 = vunpack.c.l.b16 %v867
        %v1252 = vunpack.c.l.b16 %v868
        %v1253 = vunpack.c.l.b16 %v869
        %v1254 = vunpack.c.l.b16 %v870
        %v1255 = vunpack.c.l.b16 %v871
        %v1256 = vunpack.c.l.b16 %v872
        %v1257 = vpack.c.b16 %v906, %v1241
        %v1258 = vpack.c.b16 %v908, %v1242
        %v1259 = vpack.c.b16 %v910, %v1243
        %v1260 = vpack.c.b16 %v912, %v1244
        %v1261 = vpack.c.b16 %v914, %v1245
        %v1262 = vpack.c.b16 %v916, %v1246
        %v1263 = vpack.c.b16 %v918, %v1247
        %v1264 = vpack.c.b16 %v920, %v1248
        %v1265 = vpack.c.b16 %v922, %v1249
        %v1266 = vpack.c.b16 %v924, %v1250
        %v1267 = vpack.c.b16 %v926, %v1251
        %v1268 = vpack.c.b16 %v928, %v1252
        %v1269 = vpack.c.b16 %v930, %v1253
        %v1270 = vpack.c.b16 %v932, %v1254
        %v1271 = vpack.c.b16 %v934, %v1255
        %v1272 = vpack.c.b16 %v936, %v1256
        %v1273 = vrot.slane %v1257, 1
        %v1274 = vrot.slane %v1001, 1
        %v1275 = vsel %vm692, %v1273, %v1274
        %v1276 = vrot.slane %v1258, 1
        %v1277 = vrot.slane %v1002, 1
        %v1278 = vsel %vm692, %v1276, %v1277
        %v1279 = vrot.slane %v1259, 1
        %v1280 = vrot.slane %v1003, 1
        %v1281 = vsel %vm692, %v1279, %v1280
        %v1282 = vrot.slane %v1260, 1
        %v1283 = vrot.slane %v1004, 1
        %v1284 = vsel %vm692, %v1282, %v1283
        %v1285 = vrot.slane %v1261, 1
        %v1286 = vrot.slane %v1005, 1
        %v1287 = vsel %vm692, %v1285, %v1286
        %v1288 = vrot.slane %v1262, 1
        %v1289 = vrot.slane %v1006, 1
        %v1290 = vsel %vm692, %v1288, %v1289
        %v1291 = vrot.slane %v1263, 1
        %v1292 = vrot.slane %v1007, 1
        %v1293 = vsel %vm692, %v1291, %v1292
        %v1294 = vrot.slane %v1264, 1
        %v1295 = vrot.slane %v1008, 1
        %v1296 = vsel %vm692, %v1294, %v1295
        %v1297 = vrot.slane %v1265, 1
        %v1298 = vrot.slane %v1009, 1
        %v1299 = vsel %vm692, %v1297, %v1298
        %v1300 = vrot.slane %v1266, 1
        %v1301 = vrot.slane %v1010, 1
        %v1302 = vsel %vm692, %v1300, %v1301
        %v1303 = vrot.slane %v1267, 1
        %v1304 = vrot.slane %v1011, 1
        %v1305 = vsel %vm692, %v1303, %v1304
        %v1306 = vrot.slane %v1268, 1
        %v1307 = vrot.slane %v1012, 1
        %v1308 = vsel %vm692, %v1306, %v1307
        %v1309 = vrot.slane %v1269, 1
        %v1310 = vrot.slane %v1013, 1
        %v1311 = vsel %vm692, %v1309, %v1310
        %v1312 = vrot.slane %v1270, 1
        %v1313 = vrot.slane %v1014, 1
        %v1314 = vsel %vm692, %v1312, %v1313
        %v1315 = vrot.slane %v1271, 1
        %v1316 = vrot.slane %v1015, 1
        %v1317 = vsel %vm692, %v1315, %v1316
        %v1318 = vrot.slane %v1272, 1
        %v1319 = vrot.slane %v1016, 1
        %v1320 = vsel %vm692, %v1318, %v1319
        %s1337 = scalar_lea.vmem [#allocation5], 192
        %v1338 = vld [vmem:[%s1337] sm:$0xf]
        %v1339 = vld [vmem:[%s1337 + $0x4] sm:$0xf]
        %v1340 = vld [vmem:[%s1337 + $0x8] sm:$0xf]
        %v1341 = vld [vmem:[%s1337 + $0xc] sm:$0xf]
        %v1342 = vld [vmem:[%s1337 + $0x10] sm:$0xf]
        %v1343 = vld [vmem:[%s1337 + $0x14] sm:$0xf]
        %v1344 = vld [vmem:[%s1337 + $0x18] sm:$0xf]
        %v1345 = vld [vmem:[%s1337 + $0x1c] sm:$0xf]
        %v1346 = vld [vmem:[%s1337 + $0x20] sm:$0xf]
        %v1347 = vld [vmem:[%s1337 + $0x24] sm:$0xf]
        %v1348 = vld [vmem:[%s1337 + $0x28] sm:$0xf]
        %v1349 = vld [vmem:[%s1337 + $0x2c] sm:$0xf]
        %v1350 = vld [vmem:[%s1337 + $0x30] sm:$0xf]
        %v1351 = vld [vmem:[%s1337 + $0x34] sm:$0xf]
        %v1352 = vld [vmem:[%s1337 + $0x38] sm:$0xf]
        %v1353 = vld [vmem:[%s1337 + $0x3c] sm:$0xf]
        %v1354 = vld [vmem:[%s1337 + $0x40] sm:$0xf]
        %v1355 = vld [vmem:[%s1337 + $0x44] sm:$0xf]
        %v1356 = vld [vmem:[%s1337 + $0x48] sm:$0xf]
        %v1357 = vld [vmem:[%s1337 + $0x4c] sm:$0xf]
        %v1358 = vld [vmem:[%s1337 + $0x50] sm:$0xf]
        %v1359 = vld [vmem:[%s1337 + $0x54] sm:$0xf]
        %v1360 = vld [vmem:[%s1337 + $0x58] sm:$0xf]
        %v1361 = vld [vmem:[%s1337 + $0x5c] sm:$0xf]
        %v1362 = vld [vmem:[%s1337 + $0x60] sm:$0xf]
        %v1363 = vld [vmem:[%s1337 + $0x64] sm:$0xf]
        %v1364 = vld [vmem:[%s1337 + $0x68] sm:$0xf]
        %v1365 = vld [vmem:[%s1337 + $0x6c] sm:$0xf]
        %v1366 = vld [vmem:[%s1337 + $0x70] sm:$0xf]
        %v1367 = vld [vmem:[%s1337 + $0x74] sm:$0xf]
        %v1368 = vld [vmem:[%s1337 + $0x78] sm:$0xf]
        %v1369 = vld [vmem:[%s1337 + $0x7c] sm:$0xf]
        %v1370 = vld [vmem:[%s1337 + $0x80] sm:$0xf]
        %v1371 = vld [vmem:[%s1337 + $0x84] sm:$0xf]
        %v1372 = vld [vmem:[%s1337 + $0x88] sm:$0xf]
        %v1373 = vld [vmem:[%s1337 + $0x8c] sm:$0xf]
        %v1374 = vld [vmem:[%s1337 + $0x90] sm:$0xf]
        %v1375 = vld [vmem:[%s1337 + $0x94] sm:$0xf]
        %v1376 = vld [vmem:[%s1337 + $0x98] sm:$0xf]
        %v1377 = vld [vmem:[%s1337 + $0x9c] sm:$0xf]
        %v1378 = vld [vmem:[%s1337 + $0xa0] sm:$0xf]
        %v1379 = vld [vmem:[%s1337 + $0xa4] sm:$0xf]
        %v1380 = vld [vmem:[%s1337 + $0xa8] sm:$0xf]
        %v1381 = vld [vmem:[%s1337 + $0xac] sm:$0xf]
        %v1382 = vld [vmem:[%s1337 + $0xb0] sm:$0xf]
        %v1383 = vld [vmem:[%s1337 + $0xb4] sm:$0xf]
        %v1384 = vld [vmem:[%s1337 + $0xb8] sm:$0xf]
        %v1385 = vld [vmem:[%s1337 + $0xbc] sm:$0xf]
        %v1434 = vunpack.c.l.b16 %v1338
        %v1435 = vunpack.c.l.b16 %v1339
        %v1436 = vunpack.c.l.b16 %v1340
        %v1437 = vunpack.c.l.b16 %v1341
        %v1438 = vunpack.c.l.b16 %v1342
        %v1439 = vunpack.c.l.b16 %v1343
        %v1440 = vunpack.c.l.b16 %v1344
        %v1441 = vunpack.c.l.b16 %v1345
        %v1442 = vunpack.c.l.b16 %v1346
        %v1443 = vunpack.c.l.b16 %v1347
        %v1444 = vunpack.c.l.b16 %v1348
        %v1445 = vunpack.c.l.b16 %v1349
        %v1446 = vunpack.c.l.b16 %v1350
        %v1447 = vunpack.c.l.b16 %v1351
        %v1448 = vunpack.c.l.b16 %v1352
        %v1449 = vunpack.c.l.b16 %v1353
        %v1450 = vunpack.c.l.b16 %v1354
        %v1451 = vunpack.c.l.b16 %v1355
        %v1452 = vunpack.c.l.b16 %v1356
        %v1453 = vunpack.c.l.b16 %v1357
        %v1454 = vunpack.c.l.b16 %v1358
        %v1455 = vunpack.c.l.b16 %v1359
        %v1456 = vunpack.c.l.b16 %v1360
        %v1457 = vunpack.c.l.b16 %v1361
        %v1458 = vunpack.c.l.b16 %v1362
        %v1459 = vunpack.c.l.b16 %v1363
        %v1460 = vunpack.c.l.b16 %v1364
        %v1461 = vunpack.c.l.b16 %v1365
        %v1462 = vunpack.c.l.b16 %v1366
        %v1463 = vunpack.c.l.b16 %v1367
        %v1464 = vunpack.c.l.b16 %v1368
        %v1465 = vunpack.c.l.b16 %v1369
        %v1466 = vunpack.c.l.b16 %v1370
        %v1467 = vunpack.c.l.b16 %v1371
        %v1468 = vunpack.c.l.b16 %v1372
        %v1469 = vunpack.c.l.b16 %v1373
        %v1470 = vunpack.c.l.b16 %v1374
        %v1471 = vunpack.c.l.b16 %v1375
        %v1472 = vunpack.c.l.b16 %v1376
        %v1473 = vunpack.c.l.b16 %v1377
        %v1474 = vunpack.c.l.b16 %v1378
        %v1475 = vunpack.c.l.b16 %v1379
        %v1476 = vunpack.c.l.b16 %v1380
        %v1477 = vunpack.c.l.b16 %v1381
        %v1478 = vunpack.c.l.b16 %v1382
        %v1479 = vunpack.c.l.b16 %v1383
        %v1480 = vunpack.c.l.b16 %v1384
        %v1481 = vunpack.c.l.b16 %v1385
        %v1482 = vpack.c.b16 %v1435, %v1434
        %v1483 = vpack.c.b16 %v1437, %v1436
        %v1484 = vpack.c.b16 %v1439, %v1438
        %v1485 = vpack.c.b16 %v1441, %v1440
        %v1486 = vpack.c.b16 %v1443, %v1442
        %v1487 = vpack.c.b16 %v1445, %v1444
        %v1488 = vpack.c.b16 %v1447, %v1446
        %v1489 = vpack.c.b16 %v1449, %v1448
        %v1490 = vpack.c.b16 %v1451, %v1450
        %v1491 = vpack.c.b16 %v1453, %v1452
        %v1492 = vpack.c.b16 %v1455, %v1454
        %v1493 = vpack.c.b16 %v1457, %v1456
        %v1494 = vpack.c.b16 %v1459, %v1458
        %v1495 = vpack.c.b16 %v1461, %v1460
        %v1496 = vpack.c.b16 %v1463, %v1462
        %v1497 = vpack.c.b16 %v1465, %v1464
        %v1498 = vpack.c.b16 %v1467, %v1466
        %v1499 = vpack.c.b16 %v1469, %v1468
        %v1500 = vpack.c.b16 %v1471, %v1470
        %v1501 = vpack.c.b16 %v1473, %v1472
        %v1502 = vpack.c.b16 %v1475, %v1474
        %v1503 = vpack.c.b16 %v1477, %v1476
        %v1504 = vpack.c.b16 %v1479, %v1478
        %v1505 = vpack.c.b16 %v1481, %v1480
        %1530 = vmatpush.bf16.msra.mxu0 %v1489
        %1531 = vmatpush.bf16.msra.mxu0 %v1488
        %1532 = vmatpush.bf16.msra.mxu0 %v1487
        %1533 = vmatpush.bf16.msra.mxu0 %v1486
        %1534 = vmatpush.bf16.msra.mxu0 %v1485
        %1535 = vmatpush.bf16.msra.mxu0 %v1484
        %1536 = vmatpush.bf16.msra.mxu0 %v1483
        %1537 = vmatpush.bf16.msra.mxu0 %v1482
        %1538 = vmatmul.bf16.gmra.mxu0 %v937
        %v1539 = vpop.f32.mrf.mxu0
        %v1540 = vadd.f32 0.0, %v1539
        %v1541 = vpop.f32.mrf.mxu0
        %v1542 = vadd.f32 0.0, %v1541
        %1543 = vmatmul.bf16.gmra.mxu0 %v938
        %v1544 = vpop.f32.mrf.mxu0
        %v1545 = vadd.f32 0.0, %v1544
        %v1546 = vpop.f32.mrf.mxu0
        %v1547 = vadd.f32 0.0, %v1546
        %1548 = vmatmul.bf16.gmra.mxu0 %v939
        %v1549 = vpop.f32.mrf.mxu0
        %v1550 = vadd.f32 0.0, %v1549
        %v1551 = vpop.f32.mrf.mxu0
        %v1552 = vadd.f32 0.0, %v1551
        %1553 = vmatmul.bf16.gmra.mxu0 %v940
        %v1554 = vpop.f32.mrf.mxu0
        %v1555 = vadd.f32 0.0, %v1554
        %v1556 = vpop.f32.mrf.mxu0
        %v1557 = vadd.f32 0.0, %v1556
        %1558 = vmatmul.bf16.gmra.mxu0 %v941
        %v1559 = vpop.f32.mrf.mxu0
        %v1560 = vadd.f32 0.0, %v1559
        %v1561 = vpop.f32.mrf.mxu0
        %v1562 = vadd.f32 0.0, %v1561
        %1563 = vmatmul.bf16.gmra.mxu0 %v942
        %v1564 = vpop.f32.mrf.mxu0
        %v1565 = vadd.f32 0.0, %v1564
        %v1566 = vpop.f32.mrf.mxu0
        %v1567 = vadd.f32 0.0, %v1566
        %1568 = vmatmul.bf16.gmra.mxu0 %v943
        %v1569 = vpop.f32.mrf.mxu0
        %v1570 = vadd.f32 0.0, %v1569
        %v1571 = vpop.f32.mrf.mxu0
        %v1572 = vadd.f32 0.0, %v1571
        %1573 = vmatmul.bf16.gmra.mxu0 %v944
        %v1574 = vpop.f32.mrf.mxu0
        %v1575 = vadd.f32 0.0, %v1574
        %v1576 = vpop.f32.mrf.mxu0
        %v1577 = vadd.f32 0.0, %v1576
        %1578 = vmatmul.bf16.gmra.mxu0 %v945
        %v1579 = vpop.f32.mrf.mxu0
        %v1580 = vadd.f32 0.0, %v1579
        %v1581 = vpop.f32.mrf.mxu0
        %v1582 = vadd.f32 0.0, %v1581
        %1583 = vmatmul.bf16.gmra.mxu0 %v946
        %v1584 = vpop.f32.mrf.mxu0
        %v1585 = vadd.f32 0.0, %v1584
        %v1586 = vpop.f32.mrf.mxu0
        %v1587 = vadd.f32 0.0, %v1586
        %1588 = vmatmul.bf16.gmra.mxu0 %v947
        %v1589 = vpop.f32.mrf.mxu0
        %v1590 = vadd.f32 0.0, %v1589
        %v1591 = vpop.f32.mrf.mxu0
        %v1592 = vadd.f32 0.0, %v1591
        %1593 = vmatmul.bf16.gmra.mxu0 %v948
        %v1594 = vpop.f32.mrf.mxu0
        %v1595 = vadd.f32 0.0, %v1594
        %v1596 = vpop.f32.mrf.mxu0
        %v1597 = vadd.f32 0.0, %v1596
        %1598 = vmatmul.bf16.gmra.mxu0 %v949
        %v1599 = vpop.f32.mrf.mxu0
        %v1600 = vadd.f32 0.0, %v1599
        %v1601 = vpop.f32.mrf.mxu0
        %v1602 = vadd.f32 0.0, %v1601
        %1603 = vmatmul.bf16.gmra.mxu0 %v950
        %v1604 = vpop.f32.mrf.mxu0
        %v1605 = vadd.f32 0.0, %v1604
        %v1606 = vpop.f32.mrf.mxu0
        %v1607 = vadd.f32 0.0, %v1606
        %1608 = vmatmul.bf16.gmra.mxu0 %v951
        %v1609 = vpop.f32.mrf.mxu0
        %v1610 = vadd.f32 0.0, %v1609
        %v1611 = vpop.f32.mrf.mxu0
        %v1612 = vadd.f32 0.0, %v1611
        %1613 = vmatmul.bf16.gmra.mxu0 %v952
        %v1614 = vpop.f32.mrf.mxu0
        %v1615 = vadd.f32 0.0, %v1614
        %v1616 = vpop.f32.mrf.mxu0
        %v1617 = vadd.f32 0.0, %v1616
        %1618 = vdwg.mxu0
        %1619 = vmatpush.bf16.msra.mxu0 %v1497
        %1620 = vmatpush.bf16.msra.mxu0 %v1496
        %1621 = vmatpush.bf16.msra.mxu0 %v1495
        %1622 = vmatpush.bf16.msra.mxu0 %v1494
        %1623 = vmatpush.bf16.msra.mxu0 %v1493
        %1624 = vmatpush.bf16.msra.mxu0 %v1492
        %1625 = vmatpush.bf16.msra.mxu0 %v1491
        %1626 = vmatpush.bf16.msra.mxu0 %v1490
        %1627 = vmatmul.bf16.gmra.mxu0 %v1028
        %v1628 = vpop.f32.mrf.mxu0
        %v1629 = vadd.f32 %v1540, %v1628
        %v1630 = vpop.f32.mrf.mxu0
        %v1631 = vadd.f32 %v1542, %v1630
        %1632 = vmatmul.bf16.gmra.mxu0 %v1040
        %v1633 = vpop.f32.mrf.mxu0
        %v1634 = vadd.f32 %v1545, %v1633
        %v1635 = vpop.f32.mrf.mxu0
        %v1636 = vadd.f32 %v1547, %v1635
        %1637 = vmatmul.bf16.gmra.mxu0 %v1052
        %v1638 = vpop.f32.mrf.mxu0
        %v1639 = vadd.f32 %v1550, %v1638
        %v1640 = vpop.f32.mrf.mxu0
        %v1641 = vadd.f32 %v1552, %v1640
        %1642 = vmatmul.bf16.gmra.mxu0 %v1064
        %v1643 = vpop.f32.mrf.mxu0
        %v1644 = vadd.f32 %v1555, %v1643
        %v1645 = vpop.f32.mrf.mxu0
        %v1646 = vadd.f32 %v1557, %v1645
        %1647 = vmatmul.bf16.gmra.mxu0 %v1076
        %v1648 = vpop.f32.mrf.mxu0
        %v1649 = vadd.f32 %v1560, %v1648
        %v1650 = vpop.f32.mrf.mxu0
        %v1651 = vadd.f32 %v1562, %v1650
        %1652 = vmatmul.bf16.gmra.mxu0 %v1088
        %v1653 = vpop.f32.mrf.mxu0
        %v1654 = vadd.f32 %v1565, %v1653
        %v1655 = vpop.f32.mrf.mxu0
        %v1656 = vadd.f32 %v1567, %v1655
        %1657 = vmatmul.bf16.gmra.mxu0 %v1100
        %v1658 = vpop.f32.mrf.mxu0
        %v1659 = vadd.f32 %v1570, %v1658
        %v1660 = vpop.f32.mrf.mxu0
        %v1661 = vadd.f32 %v1572, %v1660
        %1662 = vmatmul.bf16.gmra.mxu0 %v1112
        %v1663 = vpop.f32.mrf.mxu0
        %v1664 = vadd.f32 %v1575, %v1663
        %v1665 = vpop.f32.mrf.mxu0
        %v1666 = vadd.f32 %v1577, %v1665
        %1667 = vmatmul.bf16.gmra.mxu0 %v1124
        %v1668 = vpop.f32.mrf.mxu0
        %v1669 = vadd.f32 %v1580, %v1668
        %v1670 = vpop.f32.mrf.mxu0
        %v1671 = vadd.f32 %v1582, %v1670
        %1672 = vmatmul.bf16.gmra.mxu0 %v1136
        %v1673 = vpop.f32.mrf.mxu0
        %v1674 = vadd.f32 %v1585, %v1673
        %v1675 = vpop.f32.mrf.mxu0
        %v1676 = vadd.f32 %v1587, %v1675
        %1677 = vmatmul.bf16.gmra.mxu0 %v1148
        %v1678 = vpop.f32.mrf.mxu0
        %v1679 = vadd.f32 %v1590, %v1678
        %v1680 = vpop.f32.mrf.mxu0
        %v1681 = vadd.f32 %v1592, %v1680
        %1682 = vmatmul.bf16.gmra.mxu0 %v1160
        %v1683 = vpop.f32.mrf.mxu0
        %v1684 = vadd.f32 %v1595, %v1683
        %v1685 = vpop.f32.mrf.mxu0
        %v1686 = vadd.f32 %v1597, %v1685
        %1687 = vmatmul.bf16.gmra.mxu0 %v1172
        %v1688 = vpop.f32.mrf.mxu0
        %v1689 = vadd.f32 %v1600, %v1688
        %v1690 = vpop.f32.mrf.mxu0
        %v1691 = vadd.f32 %v1602, %v1690
        %1692 = vmatmul.bf16.gmra.mxu0 %v1184
        %v1693 = vpop.f32.mrf.mxu0
        %v1694 = vadd.f32 %v1605, %v1693
        %v1695 = vpop.f32.mrf.mxu0
        %v1696 = vadd.f32 %v1607, %v1695
        %1697 = vmatmul.bf16.gmra.mxu0 %v1196
        %v1698 = vpop.f32.mrf.mxu0
        %v1699 = vadd.f32 %v1610, %v1698
        %v1700 = vpop.f32.mrf.mxu0
        %v1701 = vadd.f32 %v1612, %v1700
        %1702 = vmatmul.bf16.gmra.mxu0 %v1208
        %v1703 = vpop.f32.mrf.mxu0
        %v1704 = vadd.f32 %v1615, %v1703
        %v1705 = vpop.f32.mrf.mxu0
        %v1706 = vadd.f32 %v1617, %v1705
        %1707 = vdwg.mxu0
        %1708 = vmatpush.bf16.msra.mxu0 %v1505
        %1709 = vmatpush.bf16.msra.mxu0 %v1504
        %1710 = vmatpush.bf16.msra.mxu0 %v1503
        %1711 = vmatpush.bf16.msra.mxu0 %v1502
        %1712 = vmatpush.bf16.msra.mxu0 %v1501
        %1713 = vmatpush.bf16.msra.mxu0 %v1500
        %1714 = vmatpush.bf16.msra.mxu0 %v1499
        %1715 = vmatpush.bf16.msra.mxu0 %v1498
        %1716 = vmatmul.bf16.gmra.mxu0 %v1275
        %v1717 = vpop.f32.mrf.mxu0
        %v1718 = vadd.f32 %v1629, %v1717
        %v1719 = vpop.f32.mrf.mxu0
        %v1720 = vadd.f32 %v1631, %v1719
        %1721 = vmatmul.bf16.gmra.mxu0 %v1278
        %v1722 = vpop.f32.mrf.mxu0
        %v1723 = vadd.f32 %v1634, %v1722
        %v1724 = vpop.f32.mrf.mxu0
        %v1725 = vadd.f32 %v1636, %v1724
        %1726 = vmatmul.bf16.gmra.mxu0 %v1281
        %v1727 = vpop.f32.mrf.mxu0
        %v1728 = vadd.f32 %v1639, %v1727
        %v1729 = vpop.f32.mrf.mxu0
        %v1730 = vadd.f32 %v1641, %v1729
        %1731 = vmatmul.bf16.gmra.mxu0 %v1284
        %v1732 = vpop.f32.mrf.mxu0
        %v1733 = vadd.f32 %v1644, %v1732
        %v1734 = vpop.f32.mrf.mxu0
        %v1735 = vadd.f32 %v1646, %v1734
        %1736 = vmatmul.bf16.gmra.mxu0 %v1287
        %v1737 = vpop.f32.mrf.mxu0
        %v1738 = vadd.f32 %v1649, %v1737
        %v1739 = vpop.f32.mrf.mxu0
        %v1740 = vadd.f32 %v1651, %v1739
        %1741 = vmatmul.bf16.gmra.mxu0 %v1290
        %v1742 = vpop.f32.mrf.mxu0
        %v1743 = vadd.f32 %v1654, %v1742
        %v1744 = vpop.f32.mrf.mxu0
        %v1745 = vadd.f32 %v1656, %v1744
        %1746 = vmatmul.bf16.gmra.mxu0 %v1293
        %v1747 = vpop.f32.mrf.mxu0
        %v1748 = vadd.f32 %v1659, %v1747
        %v1749 = vpop.f32.mrf.mxu0
        %v1750 = vadd.f32 %v1661, %v1749
        %1751 = vmatmul.bf16.gmra.mxu0 %v1296
        %v1752 = vpop.f32.mrf.mxu0
        %v1753 = vadd.f32 %v1664, %v1752
        %v1754 = vpop.f32.mrf.mxu0
        %v1755 = vadd.f32 %v1666, %v1754
        %1756 = vmatmul.bf16.gmra.mxu0 %v1299
        %v1757 = vpop.f32.mrf.mxu0
        %v1758 = vadd.f32 %v1669, %v1757
        %v1759 = vpop.f32.mrf.mxu0
        %v1760 = vadd.f32 %v1671, %v1759
        %1761 = vmatmul.bf16.gmra.mxu0 %v1302
        %v1762 = vpop.f32.mrf.mxu0
        %v1763 = vadd.f32 %v1674, %v1762
        %v1764 = vpop.f32.mrf.mxu0
        %v1765 = vadd.f32 %v1676, %v1764
        %1766 = vmatmul.bf16.gmra.mxu0 %v1305
        %v1767 = vpop.f32.mrf.mxu0
        %v1768 = vadd.f32 %v1679, %v1767
        %v1769 = vpop.f32.mrf.mxu0
        %v1770 = vadd.f32 %v1681, %v1769
        %1771 = vmatmul.bf16.gmra.mxu0 %v1308
        %v1772 = vpop.f32.mrf.mxu0
        %v1773 = vadd.f32 %v1684, %v1772
        %v1774 = vpop.f32.mrf.mxu0
        %v1775 = vadd.f32 %v1686, %v1774
        %1776 = vmatmul.bf16.gmra.mxu0 %v1311
        %v1777 = vpop.f32.mrf.mxu0
        %v1778 = vadd.f32 %v1689, %v1777
        %v1779 = vpop.f32.mrf.mxu0
        %v1780 = vadd.f32 %v1691, %v1779
        %1781 = vmatmul.bf16.gmra.mxu0 %v1314
        %v1782 = vpop.f32.mrf.mxu0
        %v1783 = vadd.f32 %v1694, %v1782
        %v1784 = vpop.f32.mrf.mxu0
        %v1785 = vadd.f32 %v1696, %v1784
        %1786 = vmatmul.bf16.gmra.mxu0 %v1317
        %v1787 = vpop.f32.mrf.mxu0
        %v1788 = vadd.f32 %v1699, %v1787
        %v1789 = vpop.f32.mrf.mxu0
        %v1790 = vadd.f32 %v1701, %v1789
        %1791 = vmatmul.bf16.gmra.mxu0 %v1320
        %v1792 = vpop.f32.mrf.mxu0
        %v1793 = vadd.f32 %v1704, %v1792
        %v1794 = vpop.f32.mrf.mxu0
        %v1795 = vadd.f32 %v1706, %v1794
        %1796 = vdwg.mxu0
        %v1845 = vunpack.c.l.b16 %v757
        %v1846 = vunpack.c.l.b16 %v758
        %v1847 = vunpack.c.l.b16 %v759
        %v1848 = vunpack.c.l.b16 %v760
        %v1849 = vunpack.c.l.b16 %v761
        %v1850 = vunpack.c.l.b16 %v762
        %v1851 = vunpack.c.l.b16 %v763
        %v1852 = vunpack.c.l.b16 %v764
        %v1853 = vunpack.c.l.b16 %v765
        %v1854 = vunpack.c.l.b16 %v766
        %v1855 = vunpack.c.l.b16 %v767
        %v1856 = vunpack.c.l.b16 %v768
        %v1857 = vunpack.c.l.b16 %v769
        %v1858 = vunpack.c.l.b16 %v770
        %v1859 = vunpack.c.l.b16 %v771
        %v1860 = vunpack.c.l.b16 %v772
        %v1861 = vunpack.c.l.b16 %v773
        %v1862 = vunpack.c.l.b16 %v774
        %v1863 = vunpack.c.l.b16 %v775
        %v1864 = vunpack.c.l.b16 %v776
        %v1865 = vunpack.c.l.b16 %v777
        %v1866 = vunpack.c.l.b16 %v778
        %v1867 = vunpack.c.l.b16 %v779
        %v1868 = vunpack.c.l.b16 %v780
        %v1869 = vunpack.c.l.b16 %v781
        %v1870 = vunpack.c.l.b16 %v782
        %v1871 = vunpack.c.l.b16 %v783
        %v1872 = vunpack.c.l.b16 %v784
        %v1873 = vunpack.c.l.b16 %v785
        %v1874 = vunpack.c.l.b16 %v786
        %v1875 = vunpack.c.l.b16 %v787
        %v1876 = vunpack.c.l.b16 %v788
        %v1877 = vunpack.c.l.b16 %v789
        %v1878 = vunpack.c.l.b16 %v790
        %v1879 = vunpack.c.l.b16 %v791
        %v1880 = vunpack.c.l.b16 %v792
        %v1881 = vunpack.c.l.b16 %v793
        %v1882 = vunpack.c.l.b16 %v794
        %v1883 = vunpack.c.l.b16 %v795
        %v1884 = vunpack.c.l.b16 %v796
        %v1885 = vunpack.c.l.b16 %v797
        %v1886 = vunpack.c.l.b16 %v798
        %v1887 = vunpack.c.l.b16 %v799
        %v1888 = vunpack.c.l.b16 %v800
        %v1889 = vunpack.c.l.b16 %v801
        %v1890 = vunpack.c.l.b16 %v802
        %v1891 = vunpack.c.l.b16 %v803
        %v1892 = vunpack.c.l.b16 %v804
        %v1893 = vpack.c.b16 %v1846, %v1845
        %v1894 = vpack.c.b16 %v1848, %v1847
        %v1895 = vpack.c.b16 %v1850, %v1849
        %v1896 = vpack.c.b16 %v1852, %v1851
        %v1897 = vpack.c.b16 %v1854, %v1853
        %v1898 = vpack.c.b16 %v1856, %v1855
        %v1899 = vpack.c.b16 %v1858, %v1857
        %v1900 = vpack.c.b16 %v1860, %v1859
        %v1901 = vpack.c.b16 %v1862, %v1861
        %v1902 = vpack.c.b16 %v1864, %v1863
        %v1903 = vpack.c.b16 %v1866, %v1865
        %v1904 = vpack.c.b16 %v1868, %v1867
        %v1905 = vpack.c.b16 %v1870, %v1869
        %v1906 = vpack.c.b16 %v1872, %v1871
        %v1907 = vpack.c.b16 %v1874, %v1873
        %v1908 = vpack.c.b16 %v1876, %v1875
        %v1909 = vpack.c.b16 %v1878, %v1877
        %v1910 = vpack.c.b16 %v1880, %v1879
        %v1911 = vpack.c.b16 %v1882, %v1881
        %v1912 = vpack.c.b16 %v1884, %v1883
        %v1913 = vpack.c.b16 %v1886, %v1885
        %v1914 = vpack.c.b16 %v1888, %v1887
        %v1915 = vpack.c.b16 %v1890, %v1889
        %v1916 = vpack.c.b16 %v1892, %v1891
        %1941 = vmatpush.bf16.msra.mxu0 %v1900
        %1942 = vmatpush.bf16.msra.mxu0 %v1899
        %1943 = vmatpush.bf16.msra.mxu0 %v1898
        %1944 = vmatpush.bf16.msra.mxu0 %v1897
        %1945 = vmatpush.bf16.msra.mxu0 %v1896
        %1946 = vmatpush.bf16.msra.mxu0 %v1895
        %1947 = vmatpush.bf16.msra.mxu0 %v1894
        %1948 = vmatpush.bf16.msra.mxu0 %v1893
        %1949 = vmatmul.bf16.gmra.mxu0 %v355
        %v1950 = vpop.f32.mrf.mxu0
        %v1951 = vadd.f32 %v1718, %v1950
        %v1952 = vpop.f32.mrf.mxu0
        %v1953 = vadd.f32 %v1720, %v1952
        %1954 = vmatmul.bf16.gmra.mxu0 %v356
        %v1955 = vpop.f32.mrf.mxu0
        %v1956 = vadd.f32 %v1723, %v1955
        %v1957 = vpop.f32.mrf.mxu0
        %v1958 = vadd.f32 %v1725, %v1957
        %1959 = vmatmul.bf16.gmra.mxu0 %v357
        %v1960 = vpop.f32.mrf.mxu0
        %v1961 = vadd.f32 %v1728, %v1960
        %v1962 = vpop.f32.mrf.mxu0
        %v1963 = vadd.f32 %v1730, %v1962
        %1964 = vmatmul.bf16.gmra.mxu0 %v358
        %v1965 = vpop.f32.mrf.mxu0
        %v1966 = vadd.f32 %v1733, %v1965
        %v1967 = vpop.f32.mrf.mxu0
        %v1968 = vadd.f32 %v1735, %v1967
        %1969 = vmatmul.bf16.gmra.mxu0 %v359
        %v1970 = vpop.f32.mrf.mxu0
        %v1971 = vadd.f32 %v1738, %v1970
        %v1972 = vpop.f32.mrf.mxu0
        %v1973 = vadd.f32 %v1740, %v1972
        %1974 = vmatmul.bf16.gmra.mxu0 %v360
        %v1975 = vpop.f32.mrf.mxu0
        %v1976 = vadd.f32 %v1743, %v1975
        %v1977 = vpop.f32.mrf.mxu0
        %v1978 = vadd.f32 %v1745, %v1977
        %1979 = vmatmul.bf16.gmra.mxu0 %v361
        %v1980 = vpop.f32.mrf.mxu0
        %v1981 = vadd.f32 %v1748, %v1980
        %v1982 = vpop.f32.mrf.mxu0
        %v1983 = vadd.f32 %v1750, %v1982
        %1984 = vmatmul.bf16.gmra.mxu0 %v362
        %v1985 = vpop.f32.mrf.mxu0
        %v1986 = vadd.f32 %v1753, %v1985
        %v1987 = vpop.f32.mrf.mxu0
        %v1988 = vadd.f32 %v1755, %v1987
        %1989 = vmatmul.bf16.gmra.mxu0 %v363
        %v1990 = vpop.f32.mrf.mxu0
        %v1991 = vadd.f32 %v1758, %v1990
        %v1992 = vpop.f32.mrf.mxu0
        %v1993 = vadd.f32 %v1760, %v1992
        %1994 = vmatmul.bf16.gmra.mxu0 %v364
        %v1995 = vpop.f32.mrf.mxu0
        %v1996 = vadd.f32 %v1763, %v1995
        %v1997 = vpop.f32.mrf.mxu0
        %v1998 = vadd.f32 %v1765, %v1997
        %1999 = vmatmul.bf16.gmra.mxu0 %v365
        %v2000 = vpop.f32.mrf.mxu0
        %v2001 = vadd.f32 %v1768, %v2000
        %v2002 = vpop.f32.mrf.mxu0
        %v2003 = vadd.f32 %v1770, %v2002
        %2004 = vmatmul.bf16.gmra.mxu0 %v366
        %v2005 = vpop.f32.mrf.mxu0
        %v2006 = vadd.f32 %v1773, %v2005
        %v2007 = vpop.f32.mrf.mxu0
        %v2008 = vadd.f32 %v1775, %v2007
        %2009 = vmatmul.bf16.gmra.mxu0 %v367
        %v2010 = vpop.f32.mrf.mxu0
        %v2011 = vadd.f32 %v1778, %v2010
        %v2012 = vpop.f32.mrf.mxu0
        %v2013 = vadd.f32 %v1780, %v2012
        %2014 = vmatmul.bf16.gmra.mxu0 %v368
        %v2015 = vpop.f32.mrf.mxu0
        %v2016 = vadd.f32 %v1783, %v2015
        %v2017 = vpop.f32.mrf.mxu0
        %v2018 = vadd.f32 %v1785, %v2017
        %2019 = vmatmul.bf16.gmra.mxu0 %v369
        %v2020 = vpop.f32.mrf.mxu0
        %v2021 = vadd.f32 %v1788, %v2020
        %v2022 = vpop.f32.mrf.mxu0
        %v2023 = vadd.f32 %v1790, %v2022
        %2024 = vmatmul.bf16.gmra.mxu0 %v370
        %v2025 = vpop.f32.mrf.mxu0
        %v2026 = vadd.f32 %v1793, %v2025
        %v2027 = vpop.f32.mrf.mxu0
        %v2028 = vadd.f32 %v1795, %v2027
        %2029 = vdwg.mxu0
        %2030 = vmatpush.bf16.msra.mxu0 %v1908
        %2031 = vmatpush.bf16.msra.mxu0 %v1907
        %2032 = vmatpush.bf16.msra.mxu0 %v1906
        %2033 = vmatpush.bf16.msra.mxu0 %v1905
        %2034 = vmatpush.bf16.msra.mxu0 %v1904
        %2035 = vmatpush.bf16.msra.mxu0 %v1903
        %2036 = vmatpush.bf16.msra.mxu0 %v1902
        %2037 = vmatpush.bf16.msra.mxu0 %v1901
        %2038 = vmatmul.bf16.gmra.mxu0 %v447
        %v2039 = vpop.f32.mrf.mxu0
        %v2040 = vadd.f32 %v1951, %v2039
        %v2041 = vpop.f32.mrf.mxu0
        %v2042 = vadd.f32 %v1953, %v2041
        %2043 = vmatmul.bf16.gmra.mxu0 %v459
        %v2044 = vpop.f32.mrf.mxu0
        %v2045 = vadd.f32 %v1956, %v2044
        %v2046 = vpop.f32.mrf.mxu0
        %v2047 = vadd.f32 %v1958, %v2046
        %2048 = vmatmul.bf16.gmra.mxu0 %v471
        %v2049 = vpop.f32.mrf.mxu0
        %v2050 = vadd.f32 %v1961, %v2049
        %v2051 = vpop.f32.mrf.mxu0
        %v2052 = vadd.f32 %v1963, %v2051
        %2053 = vmatmul.bf16.gmra.mxu0 %v483
        %v2054 = vpop.f32.mrf.mxu0
        %v2055 = vadd.f32 %v1966, %v2054
        %v2056 = vpop.f32.mrf.mxu0
        %v2057 = vadd.f32 %v1968, %v2056
        %2058 = vmatmul.bf16.gmra.mxu0 %v495
        %v2059 = vpop.f32.mrf.mxu0
        %v2060 = vadd.f32 %v1971, %v2059
        %v2061 = vpop.f32.mrf.mxu0
        %v2062 = vadd.f32 %v1973, %v2061
        %2063 = vmatmul.bf16.gmra.mxu0 %v507
        %v2064 = vpop.f32.mrf.mxu0
        %v2065 = vadd.f32 %v1976, %v2064
        %v2066 = vpop.f32.mrf.mxu0
        %v2067 = vadd.f32 %v1978, %v2066
        %2068 = vmatmul.bf16.gmra.mxu0 %v519
        %v2069 = vpop.f32.mrf.mxu0
        %v2070 = vadd.f32 %v1981, %v2069
        %v2071 = vpop.f32.mrf.mxu0
        %v2072 = vadd.f32 %v1983, %v2071
        %2073 = vmatmul.bf16.gmra.mxu0 %v531
        %v2074 = vpop.f32.mrf.mxu0
        %v2075 = vadd.f32 %v1986, %v2074
        %v2076 = vpop.f32.mrf.mxu0
        %v2077 = vadd.f32 %v1988, %v2076
        %2078 = vmatmul.bf16.gmra.mxu0 %v543
        %v2079 = vpop.f32.mrf.mxu0
        %v2080 = vadd.f32 %v1991, %v2079
        %v2081 = vpop.f32.mrf.mxu0
        %v2082 = vadd.f32 %v1993, %v2081
        %2083 = vmatmul.bf16.gmra.mxu0 %v555
        %v2084 = vpop.f32.mrf.mxu0
        %v2085 = vadd.f32 %v1996, %v2084
        %v2086 = vpop.f32.mrf.mxu0
        %v2087 = vadd.f32 %v1998, %v2086
        %2088 = vmatmul.bf16.gmra.mxu0 %v567
        %v2089 = vpop.f32.mrf.mxu0
        %v2090 = vadd.f32 %v2001, %v2089
        %v2091 = vpop.f32.mrf.mxu0
        %v2092 = vadd.f32 %v2003, %v2091
        %2093 = vmatmul.bf16.gmra.mxu0 %v579
        %v2094 = vpop.f32.mrf.mxu0
        %v2095 = vadd.f32 %v2006, %v2094
        %v2096 = vpop.f32.mrf.mxu0
        %v2097 = vadd.f32 %v2008, %v2096
        %2098 = vmatmul.bf16.gmra.mxu0 %v591
        %v2099 = vpop.f32.mrf.mxu0
        %v2100 = vadd.f32 %v2011, %v2099
        %v2101 = vpop.f32.mrf.mxu0
        %v2102 = vadd.f32 %v2013, %v2101
        %2103 = vmatmul.bf16.gmra.mxu0 %v603
        %v2104 = vpop.f32.mrf.mxu0
        %v2105 = vadd.f32 %v2016, %v2104
        %v2106 = vpop.f32.mrf.mxu0
        %v2107 = vadd.f32 %v2018, %v2106
        %2108 = vmatmul.bf16.gmra.mxu0 %v615
        %v2109 = vpop.f32.mrf.mxu0
        %v2110 = vadd.f32 %v2021, %v2109
        %v2111 = vpop.f32.mrf.mxu0
        %v2112 = vadd.f32 %v2023, %v2111
        %2113 = vmatmul.bf16.gmra.mxu0 %v627
        %v2114 = vpop.f32.mrf.mxu0
        %v2115 = vadd.f32 %v2026, %v2114
        %v2116 = vpop.f32.mrf.mxu0
        %v2117 = vadd.f32 %v2028, %v2116
        %2118 = vdwg.mxu0
        %2119 = vmatpush.bf16.msra.mxu0 %v1916
        %2120 = vmatpush.bf16.msra.mxu0 %v1915
        %2121 = vmatpush.bf16.msra.mxu0 %v1914
        %2122 = vmatpush.bf16.msra.mxu0 %v1913
        %2123 = vmatpush.bf16.msra.mxu0 %v1912
        %2124 = vmatpush.bf16.msra.mxu0 %v1911
        %2125 = vmatpush.bf16.msra.mxu0 %v1910
        %2126 = vmatpush.bf16.msra.mxu0 %v1909
        %2127 = vmatmul.bf16.gmra.mxu0 %v695
        %v2128 = vpop.f32.mrf.mxu0
        %v2129 = vadd.f32 %v2040, %v2128
        %v2130 = vpop.f32.mrf.mxu0
        %v2131 = vadd.f32 %v2042, %v2130
        %2132 = vmatmul.bf16.gmra.mxu0 %v698
        %v2133 = vpop.f32.mrf.mxu0
        %v2134 = vadd.f32 %v2045, %v2133
        %v2135 = vpop.f32.mrf.mxu0
        %v2136 = vadd.f32 %v2047, %v2135
        %2137 = vmatmul.bf16.gmra.mxu0 %v701
        %v2138 = vpop.f32.mrf.mxu0
        %v2139 = vadd.f32 %v2050, %v2138
        %v2140 = vpop.f32.mrf.mxu0
        %v2141 = vadd.f32 %v2052, %v2140
        %2142 = vmatmul.bf16.gmra.mxu0 %v704
        %v2143 = vpop.f32.mrf.mxu0
        %v2144 = vadd.f32 %v2055, %v2143
        %v2145 = vpop.f32.mrf.mxu0
        %v2146 = vadd.f32 %v2057, %v2145
        %2147 = vmatmul.bf16.gmra.mxu0 %v707
        %v2148 = vpop.f32.mrf.mxu0
        %v2149 = vadd.f32 %v2060, %v2148
        %v2150 = vpop.f32.mrf.mxu0
        %v2151 = vadd.f32 %v2062, %v2150
        %2152 = vmatmul.bf16.gmra.mxu0 %v710
        %v2153 = vpop.f32.mrf.mxu0
        %v2154 = vadd.f32 %v2065, %v2153
        %v2155 = vpop.f32.mrf.mxu0
        %v2156 = vadd.f32 %v2067, %v2155
        %2157 = vmatmul.bf16.gmra.mxu0 %v713
        %v2158 = vpop.f32.mrf.mxu0
        %v2159 = vadd.f32 %v2070, %v2158
        %v2160 = vpop.f32.mrf.mxu0
        %v2161 = vadd.f32 %v2072, %v2160
        %2162 = vmatmul.bf16.gmra.mxu0 %v716
        %v2163 = vpop.f32.mrf.mxu0
        %v2164 = vadd.f32 %v2075, %v2163
        %v2165 = vpop.f32.mrf.mxu0
        %v2166 = vadd.f32 %v2077, %v2165
        %2167 = vmatmul.bf16.gmra.mxu0 %v719
        %v2168 = vpop.f32.mrf.mxu0
        %v2169 = vadd.f32 %v2080, %v2168
        %v2170 = vpop.f32.mrf.mxu0
        %v2171 = vadd.f32 %v2082, %v2170
        %2172 = vmatmul.bf16.gmra.mxu0 %v722
        %v2173 = vpop.f32.mrf.mxu0
        %v2174 = vadd.f32 %v2085, %v2173
        %v2175 = vpop.f32.mrf.mxu0
        %v2176 = vadd.f32 %v2087, %v2175
        %2177 = vmatmul.bf16.gmra.mxu0 %v725
        %v2178 = vpop.f32.mrf.mxu0
        %v2179 = vadd.f32 %v2090, %v2178
        %v2180 = vpop.f32.mrf.mxu0
        %v2181 = vadd.f32 %v2092, %v2180
        %2182 = vmatmul.bf16.gmra.mxu0 %v728
        %v2183 = vpop.f32.mrf.mxu0
        %v2184 = vadd.f32 %v2095, %v2183
        %v2185 = vpop.f32.mrf.mxu0
        %v2186 = vadd.f32 %v2097, %v2185
        %2187 = vmatmul.bf16.gmra.mxu0 %v731
        %v2188 = vpop.f32.mrf.mxu0
        %v2189 = vadd.f32 %v2100, %v2188
        %v2190 = vpop.f32.mrf.mxu0
        %v2191 = vadd.f32 %v2102, %v2190
        %2192 = vmatmul.bf16.gmra.mxu0 %v734
        %v2193 = vpop.f32.mrf.mxu0
        %v2194 = vadd.f32 %v2105, %v2193
        %v2195 = vpop.f32.mrf.mxu0
        %v2196 = vadd.f32 %v2107, %v2195
        %2197 = vmatmul.bf16.gmra.mxu0 %v737
        %v2198 = vpop.f32.mrf.mxu0
        %v2199 = vadd.f32 %v2110, %v2198
        %v2200 = vpop.f32.mrf.mxu0
        %v2201 = vadd.f32 %v2112, %v2200
        %2202 = vmatmul.bf16.gmra.mxu0 %v740
        %v2203 = vpop.f32.mrf.mxu0
        %v2204 = vadd.f32 %v2115, %v2203
        %v2205 = vpop.f32.mrf.mxu0
        %v2206 = vadd.f32 %v2117, %v2205
        %2207 = vdwg.mxu0
        %s2208 = sadd.s32 %s223, 2
        %s2209 = smul.u32 %s2208, 3
        %s2210 = smul.addr %s2209, 4
        %s2211 = scalar_lea.vmem %s193, %s2210 [#allocation2]
        %v2212 = vld [vmem:[%s2211] sm:$0xf]
        %v2213 = vld [vmem:[%s2211 + $0x4] sm:$0xf]
        %v2214 = vld [vmem:[%s2211 + $0xc] sm:$0xf]
        %v2215 = vld [vmem:[%s2211 + $0x10] sm:$0xf]
        %v2216 = vld [vmem:[%s2211 + $0x18] sm:$0xf]
        %v2217 = vld [vmem:[%s2211 + $0x1c] sm:$0xf]
        %v2218 = vld [vmem:[%s2211 + $0x24] sm:$0xf]
        %v2219 = vld [vmem:[%s2211 + $0x28] sm:$0xf]
        %v2220 = vld [vmem:[%s2211 + $0x30] sm:$0xf]
        %v2221 = vld [vmem:[%s2211 + $0x34] sm:$0xf]
        %v2222 = vld [vmem:[%s2211 + $0x3c] sm:$0xf]
        %v2223 = vld [vmem:[%s2211 + $0x40] sm:$0xf]
        %v2224 = vld [vmem:[%s2211 + $0x48] sm:$0xf]
        %v2225 = vld [vmem:[%s2211 + $0x4c] sm:$0xf]
        %v2226 = vld [vmem:[%s2211 + $0x54] sm:$0xf]
        %v2227 = vld [vmem:[%s2211 + $0x58] sm:$0xf]
        %v2228 = vld [vmem:[%s2211 + $0x60] sm:$0xf]
        %v2229 = vld [vmem:[%s2211 + $0x64] sm:$0xf]
        %v2230 = vld [vmem:[%s2211 + $0x6c] sm:$0xf]
        %v2231 = vld [vmem:[%s2211 + $0x70] sm:$0xf]
        %v2232 = vld [vmem:[%s2211 + $0x78] sm:$0xf]
        %v2233 = vld [vmem:[%s2211 + $0x7c] sm:$0xf]
        %v2234 = vld [vmem:[%s2211 + $0x84] sm:$0xf]
        %v2235 = vld [vmem:[%s2211 + $0x88] sm:$0xf]
        %v2236 = vld [vmem:[%s2211 + $0x90] sm:$0xf]
        %v2237 = vld [vmem:[%s2211 + $0x94] sm:$0xf]
        %v2238 = vld [vmem:[%s2211 + $0x9c] sm:$0xf]
        %v2239 = vld [vmem:[%s2211 + $0xa0] sm:$0xf]
        %v2240 = vld [vmem:[%s2211 + $0xa8] sm:$0xf]
        %v2241 = vld [vmem:[%s2211 + $0xac] sm:$0xf]
        %v2242 = vld [vmem:[%s2211 + $0xb4] sm:$0xf]
        %v2243 = vld [vmem:[%s2211 + $0xb8] sm:$0xf]
        %v2244 = vld [vmem:[%s2211 + $0x8] sm:$0x1]
        %v2245 = vld [vmem:[%s2211 + $0x14] sm:$0x1]
        %v2246 = vld [vmem:[%s2211 + $0x20] sm:$0x1]
        %v2247 = vld [vmem:[%s2211 + $0x2c] sm:$0x1]
        %v2248 = vld [vmem:[%s2211 + $0x38] sm:$0x1]
        %v2249 = vld [vmem:[%s2211 + $0x44] sm:$0x1]
        %v2250 = vld [vmem:[%s2211 + $0x50] sm:$0x1]
        %v2251 = vld [vmem:[%s2211 + $0x5c] sm:$0x1]
        %v2252 = vld [vmem:[%s2211 + $0x68] sm:$0x1]
        %v2253 = vld [vmem:[%s2211 + $0x74] sm:$0x1]
        %v2254 = vld [vmem:[%s2211 + $0x80] sm:$0x1]
        %v2255 = vld [vmem:[%s2211 + $0x8c] sm:$0x1]
        %v2256 = vld [vmem:[%s2211 + $0x98] sm:$0x1]
        %v2257 = vld [vmem:[%s2211 + $0xa4] sm:$0x1]
        %v2258 = vld [vmem:[%s2211 + $0xb0] sm:$0x1]
        %v2259 = vld [vmem:[%s2211 + $0xbc] sm:$0x1]
        %v2260 = vld [vmem:[%s2211] sm:$0xe]
        %v2261 = vld [vmem:[%s2211 + $0xc] sm:$0xe]
        %v2262 = vld [vmem:[%s2211 + $0x18] sm:$0xe]
        %v2263 = vld [vmem:[%s2211 + $0x24] sm:$0xe]
        %v2264 = vld [vmem:[%s2211 + $0x30] sm:$0xe]
        %v2265 = vld [vmem:[%s2211 + $0x3c] sm:$0xe]
        %v2266 = vld [vmem:[%s2211 + $0x48] sm:$0xe]
        %v2267 = vld [vmem:[%s2211 + $0x54] sm:$0xe]
        %v2268 = vld [vmem:[%s2211 + $0x60] sm:$0xe]
        %v2269 = vld [vmem:[%s2211 + $0x6c] sm:$0xe]
        %v2270 = vld [vmem:[%s2211 + $0x78] sm:$0xe]
        %v2271 = vld [vmem:[%s2211 + $0x84] sm:$0xe]
        %v2272 = vld [vmem:[%s2211 + $0x90] sm:$0xe]
        %v2273 = vld [vmem:[%s2211 + $0x9c] sm:$0xe]
        %v2274 = vld [vmem:[%s2211 + $0xa8] sm:$0xe]
        %v2275 = vld [vmem:[%s2211 + $0xb4] sm:$0xe]
        %v2308 = vunpack.c.l.b16 %v2212
        %v2309 = vunpack.c.l.b16 %v2213
        %v2310 = vunpack.c.l.b16 %v2214
        %v2311 = vunpack.c.l.b16 %v2215
        %v2312 = vunpack.c.l.b16 %v2216
        %v2313 = vunpack.c.l.b16 %v2217
        %v2314 = vunpack.c.l.b16 %v2218
        %v2315 = vunpack.c.l.b16 %v2219
        %v2316 = vunpack.c.l.b16 %v2220
        %v2317 = vunpack.c.l.b16 %v2221
        %v2318 = vunpack.c.l.b16 %v2222
        %v2319 = vunpack.c.l.b16 %v2223
        %v2320 = vunpack.c.l.b16 %v2224
        %v2321 = vunpack.c.l.b16 %v2225
        %v2322 = vunpack.c.l.b16 %v2226
        %v2323 = vunpack.c.l.b16 %v2227
        %v2324 = vunpack.c.l.b16 %v2228
        %v2325 = vunpack.c.l.b16 %v2229
        %v2326 = vunpack.c.l.b16 %v2230
        %v2327 = vunpack.c.l.b16 %v2231
        %v2328 = vunpack.c.l.b16 %v2232
        %v2329 = vunpack.c.l.b16 %v2233
        %v2330 = vunpack.c.l.b16 %v2234
        %v2331 = vunpack.c.l.b16 %v2235
        %v2332 = vunpack.c.l.b16 %v2236
        %v2333 = vunpack.c.l.b16 %v2237
        %v2334 = vunpack.c.l.b16 %v2238
        %v2335 = vunpack.c.l.b16 %v2239
        %v2336 = vunpack.c.l.b16 %v2240
        %v2337 = vunpack.c.l.b16 %v2241
        %v2338 = vunpack.c.l.b16 %v2242
        %v2339 = vunpack.c.l.b16 %v2243
        %v2340 = vpack.c.b16 %v2309, %v2308
        %v2341 = vpack.c.b16 %v2311, %v2310
        %v2342 = vpack.c.b16 %v2313, %v2312
        %v2343 = vpack.c.b16 %v2315, %v2314
        %v2344 = vpack.c.b16 %v2317, %v2316
        %v2345 = vpack.c.b16 %v2319, %v2318
        %v2346 = vpack.c.b16 %v2321, %v2320
        %v2347 = vpack.c.b16 %v2323, %v2322
        %v2348 = vpack.c.b16 %v2325, %v2324
        %v2349 = vpack.c.b16 %v2327, %v2326
        %v2350 = vpack.c.b16 %v2329, %v2328
        %v2351 = vpack.c.b16 %v2331, %v2330
        %v2352 = vpack.c.b16 %v2333, %v2332
        %v2353 = vpack.c.b16 %v2335, %v2334
        %v2354 = vpack.c.b16 %v2337, %v2336
        %v2355 = vpack.c.b16 %v2339, %v2338
        %v2388 = vunpack.c.l.b16 %v2244
        %v2389 = vunpack.c.l.b16 %v2245
        %v2390 = vunpack.c.l.b16 %v2246
        %v2391 = vunpack.c.l.b16 %v2247
        %v2392 = vunpack.c.l.b16 %v2248
        %v2393 = vunpack.c.l.b16 %v2249
        %v2394 = vunpack.c.l.b16 %v2250
        %v2395 = vunpack.c.l.b16 %v2251
        %v2396 = vunpack.c.l.b16 %v2252
        %v2397 = vunpack.c.l.b16 %v2253
        %v2398 = vunpack.c.l.b16 %v2254
        %v2399 = vunpack.c.l.b16 %v2255
        %v2400 = vunpack.c.l.b16 %v2256
        %v2401 = vunpack.c.l.b16 %v2257
        %v2402 = vunpack.c.l.b16 %v2258
        %v2403 = vunpack.c.l.b16 %v2259
        %v2404 = vpack.c.b16 %v2388, %v2388
        %v2405 = vpack.c.b16 %v2389, %v2389
        %v2406 = vpack.c.b16 %v2390, %v2390
        %v2407 = vpack.c.b16 %v2391, %v2391
        %v2408 = vpack.c.b16 %v2392, %v2392
        %v2409 = vpack.c.b16 %v2393, %v2393
        %v2410 = vpack.c.b16 %v2394, %v2394
        %v2411 = vpack.c.b16 %v2395, %v2395
        %v2412 = vpack.c.b16 %v2396, %v2396
        %v2413 = vpack.c.b16 %v2397, %v2397
        %v2414 = vpack.c.b16 %v2398, %v2398
        %v2415 = vpack.c.b16 %v2399, %v2399
        %v2416 = vpack.c.b16 %v2400, %v2400
        %v2417 = vpack.c.b16 %v2401, %v2401
        %v2418 = vpack.c.b16 %v2402, %v2402
        %v2419 = vpack.c.b16 %v2403, %v2403
        %v2421 = vshrl.u32 %v2340, 16
        %v2423 = vshll.u32 %v2340, 16
        %v2425 = vrot.slane %v2423, 1
        %v2426 = vor.u32 %v2421, %v2425
        %v2428 = vshll.u32 %v2404, 16
        %v2430 = vrot.slane %v2428, 1
        %v2431 = vsel %vm435, %v2426, %v2430
        %v2433 = vshrl.u32 %v2341, 16
        %v2435 = vshll.u32 %v2341, 16
        %v2437 = vrot.slane %v2435, 1
        %v2438 = vor.u32 %v2433, %v2437
        %v2440 = vshll.u32 %v2405, 16
        %v2442 = vrot.slane %v2440, 1
        %v2443 = vsel %vm435, %v2438, %v2442
        %v2445 = vshrl.u32 %v2342, 16
        %v2447 = vshll.u32 %v2342, 16
        %v2449 = vrot.slane %v2447, 1
        %v2450 = vor.u32 %v2445, %v2449
        %v2452 = vshll.u32 %v2406, 16
        %v2454 = vrot.slane %v2452, 1
        %v2455 = vsel %vm435, %v2450, %v2454
        %v2457 = vshrl.u32 %v2343, 16
        %v2459 = vshll.u32 %v2343, 16
        %v2461 = vrot.slane %v2459, 1
        %v2462 = vor.u32 %v2457, %v2461
        %v2464 = vshll.u32 %v2407, 16
        %v2466 = vrot.slane %v2464, 1
        %v2467 = vsel %vm435, %v2462, %v2466
        %v2469 = vshrl.u32 %v2344, 16
        %v2471 = vshll.u32 %v2344, 16
        %v2473 = vrot.slane %v2471, 1
        %v2474 = vor.u32 %v2469, %v2473
        %v2476 = vshll.u32 %v2408, 16
        %v2478 = vrot.slane %v2476, 1
        %v2479 = vsel %vm435, %v2474, %v2478
        %v2481 = vshrl.u32 %v2345, 16
        %v2483 = vshll.u32 %v2345, 16
        %v2485 = vrot.slane %v2483, 1
        %v2486 = vor.u32 %v2481, %v2485
        %v2488 = vshll.u32 %v2409, 16
        %v2490 = vrot.slane %v2488, 1
        %v2491 = vsel %vm435, %v2486, %v2490
        %v2493 = vshrl.u32 %v2346, 16
        %v2495 = vshll.u32 %v2346, 16
        %v2497 = vrot.slane %v2495, 1
        %v2498 = vor.u32 %v2493, %v2497
        %v2500 = vshll.u32 %v2410, 16
        %v2502 = vrot.slane %v2500, 1
        %v2503 = vsel %vm435, %v2498, %v2502
        %v2505 = vshrl.u32 %v2347, 16
        %v2507 = vshll.u32 %v2347, 16
        %v2509 = vrot.slane %v2507, 1
        %v2510 = vor.u32 %v2505, %v2509
        %v2512 = vshll.u32 %v2411, 16
        %v2514 = vrot.slane %v2512, 1
        %v2515 = vsel %vm435, %v2510, %v2514
        %v2517 = vshrl.u32 %v2348, 16
        %v2519 = vshll.u32 %v2348, 16
        %v2521 = vrot.slane %v2519, 1
        %v2522 = vor.u32 %v2517, %v2521
        %v2524 = vshll.u32 %v2412, 16
        %v2526 = vrot.slane %v2524, 1
        %v2527 = vsel %vm435, %v2522, %v2526
        %v2529 = vshrl.u32 %v2349, 16
        %v2531 = vshll.u32 %v2349, 16
        %v2533 = vrot.slane %v2531, 1
        %v2534 = vor.u32 %v2529, %v2533
        %v2536 = vshll.u32 %v2413, 16
        %v2538 = vrot.slane %v2536, 1
        %v2539 = vsel %vm435, %v2534, %v2538
        %v2541 = vshrl.u32 %v2350, 16
        %v2543 = vshll.u32 %v2350, 16
        %v2545 = vrot.slane %v2543, 1
        %v2546 = vor.u32 %v2541, %v2545
        %v2548 = vshll.u32 %v2414, 16
        %v2550 = vrot.slane %v2548, 1
        %v2551 = vsel %vm435, %v2546, %v2550
        %v2553 = vshrl.u32 %v2351, 16
        %v2555 = vshll.u32 %v2351, 16
        %v2557 = vrot.slane %v2555, 1
        %v2558 = vor.u32 %v2553, %v2557
        %v2560 = vshll.u32 %v2415, 16
        %v2562 = vrot.slane %v2560, 1
        %v2563 = vsel %vm435, %v2558, %v2562
        %v2565 = vshrl.u32 %v2352, 16
        %v2567 = vshll.u32 %v2352, 16
        %v2569 = vrot.slane %v2567, 1
        %v2570 = vor.u32 %v2565, %v2569
        %v2572 = vshll.u32 %v2416, 16
        %v2574 = vrot.slane %v2572, 1
        %v2575 = vsel %vm435, %v2570, %v2574
        %v2577 = vshrl.u32 %v2353, 16
        %v2579 = vshll.u32 %v2353, 16
        %v2581 = vrot.slane %v2579, 1
        %v2582 = vor.u32 %v2577, %v2581
        %v2584 = vshll.u32 %v2417, 16
        %v2586 = vrot.slane %v2584, 1
        %v2587 = vsel %vm435, %v2582, %v2586
        %v2589 = vshrl.u32 %v2354, 16
        %v2591 = vshll.u32 %v2354, 16
        %v2593 = vrot.slane %v2591, 1
        %v2594 = vor.u32 %v2589, %v2593
        %v2596 = vshll.u32 %v2418, 16
        %v2598 = vrot.slane %v2596, 1
        %v2599 = vsel %vm435, %v2594, %v2598
        %v2601 = vshrl.u32 %v2355, 16
        %v2603 = vshll.u32 %v2355, 16
        %v2605 = vrot.slane %v2603, 1
        %v2606 = vor.u32 %v2601, %v2605
        %v2608 = vshll.u32 %v2419, 16
        %v2610 = vrot.slane %v2608, 1
        %v2611 = vsel %vm435, %v2606, %v2610
        %v2644 = vunpack.c.l.b16 %v2260
        %v2645 = vunpack.c.l.b16 %v2261
        %v2646 = vunpack.c.l.b16 %v2262
        %v2647 = vunpack.c.l.b16 %v2263
        %v2648 = vunpack.c.l.b16 %v2264
        %v2649 = vunpack.c.l.b16 %v2265
        %v2650 = vunpack.c.l.b16 %v2266
        %v2651 = vunpack.c.l.b16 %v2267
        %v2652 = vunpack.c.l.b16 %v2268
        %v2653 = vunpack.c.l.b16 %v2269
        %v2654 = vunpack.c.l.b16 %v2270
        %v2655 = vunpack.c.l.b16 %v2271
        %v2656 = vunpack.c.l.b16 %v2272
        %v2657 = vunpack.c.l.b16 %v2273
        %v2658 = vunpack.c.l.b16 %v2274
        %v2659 = vunpack.c.l.b16 %v2275
        %v2660 = vpack.c.b16 %v2309, %v2644
        %v2661 = vpack.c.b16 %v2311, %v2645
        %v2662 = vpack.c.b16 %v2313, %v2646
        %v2663 = vpack.c.b16 %v2315, %v2647
        %v2664 = vpack.c.b16 %v2317, %v2648
        %v2665 = vpack.c.b16 %v2319, %v2649
        %v2666 = vpack.c.b16 %v2321, %v2650
        %v2667 = vpack.c.b16 %v2323, %v2651
        %v2668 = vpack.c.b16 %v2325, %v2652
        %v2669 = vpack.c.b16 %v2327, %v2653
        %v2670 = vpack.c.b16 %v2329, %v2654
        %v2671 = vpack.c.b16 %v2331, %v2655
        %v2672 = vpack.c.b16 %v2333, %v2656
        %v2673 = vpack.c.b16 %v2335, %v2657
        %v2674 = vpack.c.b16 %v2337, %v2658
        %v2675 = vpack.c.b16 %v2339, %v2659
        %v2676 = vrot.slane %v2660, 1
        %v2677 = vrot.slane %v2404, 1
        %v2678 = vsel %vm692, %v2676, %v2677
        %v2679 = vrot.slane %v2661, 1
        %v2680 = vrot.slane %v2405, 1
        %v2681 = vsel %vm692, %v2679, %v2680
        %v2682 = vrot.slane %v2662, 1
        %v2683 = vrot.slane %v2406, 1
        %v2684 = vsel %vm692, %v2682, %v2683
        %v2685 = vrot.slane %v2663, 1
        %v2686 = vrot.slane %v2407, 1
        %v2687 = vsel %vm692, %v2685, %v2686
        %v2688 = vrot.slane %v2664, 1
        %v2689 = vrot.slane %v2408, 1
        %v2690 = vsel %vm692, %v2688, %v2689
        %v2691 = vrot.slane %v2665, 1
        %v2692 = vrot.slane %v2409, 1
        %v2693 = vsel %vm692, %v2691, %v2692
        %v2694 = vrot.slane %v2666, 1
        %v2695 = vrot.slane %v2410, 1
        %v2696 = vsel %vm692, %v2694, %v2695
        %v2697 = vrot.slane %v2667, 1
        %v2698 = vrot.slane %v2411, 1
        %v2699 = vsel %vm692, %v2697, %v2698
        %v2700 = vrot.slane %v2668, 1
        %v2701 = vrot.slane %v2412, 1
        %v2702 = vsel %vm692, %v2700, %v2701
        %v2703 = vrot.slane %v2669, 1
        %v2704 = vrot.slane %v2413, 1
        %v2705 = vsel %vm692, %v2703, %v2704
        %v2706 = vrot.slane %v2670, 1
        %v2707 = vrot.slane %v2414, 1
        %v2708 = vsel %vm692, %v2706, %v2707
        %v2709 = vrot.slane %v2671, 1
        %v2710 = vrot.slane %v2415, 1
        %v2711 = vsel %vm692, %v2709, %v2710
        %v2712 = vrot.slane %v2672, 1
        %v2713 = vrot.slane %v2416, 1
        %v2714 = vsel %vm692, %v2712, %v2713
        %v2715 = vrot.slane %v2673, 1
        %v2716 = vrot.slane %v2417, 1
        %v2717 = vsel %vm692, %v2715, %v2716
        %v2718 = vrot.slane %v2674, 1
        %v2719 = vrot.slane %v2418, 1
        %v2720 = vsel %vm692, %v2718, %v2719
        %v2721 = vrot.slane %v2675, 1
        %v2722 = vrot.slane %v2419, 1
        %v2723 = vsel %vm692, %v2721, %v2722
        %s2740 = scalar_lea.vmem [#allocation5], 384
        %v2741 = vld [vmem:[%s2740] sm:$0xf]
        %v2742 = vld [vmem:[%s2740 + $0x4] sm:$0xf]
        %v2743 = vld [vmem:[%s2740 + $0x8] sm:$0xf]
        %v2744 = vld [vmem:[%s2740 + $0xc] sm:$0xf]
        %v2745 = vld [vmem:[%s2740 + $0x10] sm:$0xf]
        %v2746 = vld [vmem:[%s2740 + $0x14] sm:$0xf]
        %v2747 = vld [vmem:[%s2740 + $0x18] sm:$0xf]
        %v2748 = vld [vmem:[%s2740 + $0x1c] sm:$0xf]
        %v2749 = vld [vmem:[%s2740 + $0x20] sm:$0xf]
        %v2750 = vld [vmem:[%s2740 + $0x24] sm:$0xf]
        %v2751 = vld [vmem:[%s2740 + $0x28] sm:$0xf]
        %v2752 = vld [vmem:[%s2740 + $0x2c] sm:$0xf]
        %v2753 = vld [vmem:[%s2740 + $0x30] sm:$0xf]
        %v2754 = vld [vmem:[%s2740 + $0x34] sm:$0xf]
        %v2755 = vld [vmem:[%s2740 + $0x38] sm:$0xf]
        %v2756 = vld [vmem:[%s2740 + $0x3c] sm:$0xf]
        %v2757 = vld [vmem:[%s2740 + $0x40] sm:$0xf]
        %v2758 = vld [vmem:[%s2740 + $0x44] sm:$0xf]
        %v2759 = vld [vmem:[%s2740 + $0x48] sm:$0xf]
        %v2760 = vld [vmem:[%s2740 + $0x4c] sm:$0xf]
        %v2761 = vld [vmem:[%s2740 + $0x50] sm:$0xf]
        %v2762 = vld [vmem:[%s2740 + $0x54] sm:$0xf]
        %v2763 = vld [vmem:[%s2740 + $0x58] sm:$0xf]
        %v2764 = vld [vmem:[%s2740 + $0x5c] sm:$0xf]
        %v2765 = vld [vmem:[%s2740 + $0x60] sm:$0xf]
        %v2766 = vld [vmem:[%s2740 + $0x64] sm:$0xf]
        %v2767 = vld [vmem:[%s2740 + $0x68] sm:$0xf]
        %v2768 = vld [vmem:[%s2740 + $0x6c] sm:$0xf]
        %v2769 = vld [vmem:[%s2740 + $0x70] sm:$0xf]
        %v2770 = vld [vmem:[%s2740 + $0x74] sm:$0xf]
        %v2771 = vld [vmem:[%s2740 + $0x78] sm:$0xf]
        %v2772 = vld [vmem:[%s2740 + $0x7c] sm:$0xf]
        %v2773 = vld [vmem:[%s2740 + $0x80] sm:$0xf]
        %v2774 = vld [vmem:[%s2740 + $0x84] sm:$0xf]
        %v2775 = vld [vmem:[%s2740 + $0x88] sm:$0xf]
        %v2776 = vld [vmem:[%s2740 + $0x8c] sm:$0xf]
        %v2777 = vld [vmem:[%s2740 + $0x90] sm:$0xf]
        %v2778 = vld [vmem:[%s2740 + $0x94] sm:$0xf]
        %v2779 = vld [vmem:[%s2740 + $0x98] sm:$0xf]
        %v2780 = vld [vmem:[%s2740 + $0x9c] sm:$0xf]
        %v2781 = vld [vmem:[%s2740 + $0xa0] sm:$0xf]
        %v2782 = vld [vmem:[%s2740 + $0xa4] sm:$0xf]
        %v2783 = vld [vmem:[%s2740 + $0xa8] sm:$0xf]
        %v2784 = vld [vmem:[%s2740 + $0xac] sm:$0xf]
        %v2785 = vld [vmem:[%s2740 + $0xb0] sm:$0xf]
        %v2786 = vld [vmem:[%s2740 + $0xb4] sm:$0xf]
        %v2787 = vld [vmem:[%s2740 + $0xb8] sm:$0xf]
        %v2788 = vld [vmem:[%s2740 + $0xbc] sm:$0xf]
        %v2837 = vunpack.c.l.b16 %v2741
        %v2838 = vunpack.c.l.b16 %v2742
        %v2839 = vunpack.c.l.b16 %v2743
        %v2840 = vunpack.c.l.b16 %v2744
        %v2841 = vunpack.c.l.b16 %v2745
        %v2842 = vunpack.c.l.b16 %v2746
        %v2843 = vunpack.c.l.b16 %v2747
        %v2844 = vunpack.c.l.b16 %v2748
        %v2845 = vunpack.c.l.b16 %v2749
        %v2846 = vunpack.c.l.b16 %v2750
        %v2847 = vunpack.c.l.b16 %v2751
        %v2848 = vunpack.c.l.b16 %v2752
        %v2849 = vunpack.c.l.b16 %v2753
        %v2850 = vunpack.c.l.b16 %v2754
        %v2851 = vunpack.c.l.b16 %v2755
        %v2852 = vunpack.c.l.b16 %v2756
        %v2853 = vunpack.c.l.b16 %v2757
        %v2854 = vunpack.c.l.b16 %v2758
        %v2855 = vunpack.c.l.b16 %v2759
        %v2856 = vunpack.c.l.b16 %v2760
        %v2857 = vunpack.c.l.b16 %v2761
        %v2858 = vunpack.c.l.b16 %v2762
        %v2859 = vunpack.c.l.b16 %v2763
        %v2860 = vunpack.c.l.b16 %v2764
        %v2861 = vunpack.c.l.b16 %v2765
        %v2862 = vunpack.c.l.b16 %v2766
        %v2863 = vunpack.c.l.b16 %v2767
        %v2864 = vunpack.c.l.b16 %v2768
        %v2865 = vunpack.c.l.b16 %v2769
        %v2866 = vunpack.c.l.b16 %v2770
        %v2867 = vunpack.c.l.b16 %v2771
        %v2868 = vunpack.c.l.b16 %v2772
        %v2869 = vunpack.c.l.b16 %v2773
        %v2870 = vunpack.c.l.b16 %v2774
        %v2871 = vunpack.c.l.b16 %v2775
        %v2872 = vunpack.c.l.b16 %v2776
        %v2873 = vunpack.c.l.b16 %v2777
        %v2874 = vunpack.c.l.b16 %v2778
        %v2875 = vunpack.c.l.b16 %v2779
        %v2876 = vunpack.c.l.b16 %v2780
        %v2877 = vunpack.c.l.b16 %v2781
        %v2878 = vunpack.c.l.b16 %v2782
        %v2879 = vunpack.c.l.b16 %v2783
        %v2880 = vunpack.c.l.b16 %v2784
        %v2881 = vunpack.c.l.b16 %v2785
        %v2882 = vunpack.c.l.b16 %v2786
        %v2883 = vunpack.c.l.b16 %v2787
        %v2884 = vunpack.c.l.b16 %v2788
        %v2885 = vpack.c.b16 %v2838, %v2837
        %v2886 = vpack.c.b16 %v2840, %v2839
        %v2887 = vpack.c.b16 %v2842, %v2841
        %v2888 = vpack.c.b16 %v2844, %v2843
        %v2889 = vpack.c.b16 %v2846, %v2845
        %v2890 = vpack.c.b16 %v2848, %v2847
        %v2891 = vpack.c.b16 %v2850, %v2849
        %v2892 = vpack.c.b16 %v2852, %v2851
        %v2893 = vpack.c.b16 %v2854, %v2853
        %v2894 = vpack.c.b16 %v2856, %v2855
        %v2895 = vpack.c.b16 %v2858, %v2857
        %v2896 = vpack.c.b16 %v2860, %v2859
        %v2897 = vpack.c.b16 %v2862, %v2861
        %v2898 = vpack.c.b16 %v2864, %v2863
        %v2899 = vpack.c.b16 %v2866, %v2865
        %v2900 = vpack.c.b16 %v2868, %v2867
        %v2901 = vpack.c.b16 %v2870, %v2869
        %v2902 = vpack.c.b16 %v2872, %v2871
        %v2903 = vpack.c.b16 %v2874, %v2873
        %v2904 = vpack.c.b16 %v2876, %v2875
        %v2905 = vpack.c.b16 %v2878, %v2877
        %v2906 = vpack.c.b16 %v2880, %v2879
        %v2907 = vpack.c.b16 %v2882, %v2881
        %v2908 = vpack.c.b16 %v2884, %v2883
        %2933 = vmatpush.bf16.msra.mxu0 %v2892
        %2934 = vmatpush.bf16.msra.mxu0 %v2891
        %2935 = vmatpush.bf16.msra.mxu0 %v2890
        %2936 = vmatpush.bf16.msra.mxu0 %v2889
        %2937 = vmatpush.bf16.msra.mxu0 %v2888
        %2938 = vmatpush.bf16.msra.mxu0 %v2887
        %2939 = vmatpush.bf16.msra.mxu0 %v2886
        %2940 = vmatpush.bf16.msra.mxu0 %v2885
        %2941 = vmatmul.bf16.gmra.mxu0 %v2340
        %v2942 = vpop.f32.mrf.mxu0
        %v2943 = vadd.f32 0.0, %v2942
        %v2944 = vpop.f32.mrf.mxu0
        %v2945 = vadd.f32 0.0, %v2944
        %2946 = vmatmul.bf16.gmra.mxu0 %v2341
        %v2947 = vpop.f32.mrf.mxu0
        %v2948 = vadd.f32 0.0, %v2947
        %v2949 = vpop.f32.mrf.mxu0
        %v2950 = vadd.f32 0.0, %v2949
        %2951 = vmatmul.bf16.gmra.mxu0 %v2342
        %v2952 = vpop.f32.mrf.mxu0
        %v2953 = vadd.f32 0.0, %v2952
        %v2954 = vpop.f32.mrf.mxu0
        %v2955 = vadd.f32 0.0, %v2954
        %2956 = vmatmul.bf16.gmra.mxu0 %v2343
        %v2957 = vpop.f32.mrf.mxu0
        %v2958 = vadd.f32 0.0, %v2957
        %v2959 = vpop.f32.mrf.mxu0
        %v2960 = vadd.f32 0.0, %v2959
        %2961 = vmatmul.bf16.gmra.mxu0 %v2344
        %v2962 = vpop.f32.mrf.mxu0
        %v2963 = vadd.f32 0.0, %v2962
        %v2964 = vpop.f32.mrf.mxu0
        %v2965 = vadd.f32 0.0, %v2964
        %2966 = vmatmul.bf16.gmra.mxu0 %v2345
        %v2967 = vpop.f32.mrf.mxu0
        %v2968 = vadd.f32 0.0, %v2967
        %v2969 = vpop.f32.mrf.mxu0
        %v2970 = vadd.f32 0.0, %v2969
        %2971 = vmatmul.bf16.gmra.mxu0 %v2346
        %v2972 = vpop.f32.mrf.mxu0
        %v2973 = vadd.f32 0.0, %v2972
        %v2974 = vpop.f32.mrf.mxu0
        %v2975 = vadd.f32 0.0, %v2974
        %2976 = vmatmul.bf16.gmra.mxu0 %v2347
        %v2977 = vpop.f32.mrf.mxu0
        %v2978 = vadd.f32 0.0, %v2977
        %v2979 = vpop.f32.mrf.mxu0
        %v2980 = vadd.f32 0.0, %v2979
        %2981 = vmatmul.bf16.gmra.mxu0 %v2348
        %v2982 = vpop.f32.mrf.mxu0
        %v2983 = vadd.f32 0.0, %v2982
        %v2984 = vpop.f32.mrf.mxu0
        %v2985 = vadd.f32 0.0, %v2984
        %2986 = vmatmul.bf16.gmra.mxu0 %v2349
        %v2987 = vpop.f32.mrf.mxu0
        %v2988 = vadd.f32 0.0, %v2987
        %v2989 = vpop.f32.mrf.mxu0
        %v2990 = vadd.f32 0.0, %v2989
        %2991 = vmatmul.bf16.gmra.mxu0 %v2350
        %v2992 = vpop.f32.mrf.mxu0
        %v2993 = vadd.f32 0.0, %v2992
        %v2994 = vpop.f32.mrf.mxu0
        %v2995 = vadd.f32 0.0, %v2994
        %2996 = vmatmul.bf16.gmra.mxu0 %v2351
        %v2997 = vpop.f32.mrf.mxu0
        %v2998 = vadd.f32 0.0, %v2997
        %v2999 = vpop.f32.mrf.mxu0
        %v3000 = vadd.f32 0.0, %v2999
        %3001 = vmatmul.bf16.gmra.mxu0 %v2352
        %v3002 = vpop.f32.mrf.mxu0
        %v3003 = vadd.f32 0.0, %v3002
        %v3004 = vpop.f32.mrf.mxu0
        %v3005 = vadd.f32 0.0, %v3004
        %3006 = vmatmul.bf16.gmra.mxu0 %v2353
        %v3007 = vpop.f32.mrf.mxu0
        %v3008 = vadd.f32 0.0, %v3007
        %v3009 = vpop.f32.mrf.mxu0
        %v3010 = vadd.f32 0.0, %v3009
        %3011 = vmatmul.bf16.gmra.mxu0 %v2354
        %v3012 = vpop.f32.mrf.mxu0
        %v3013 = vadd.f32 0.0, %v3012
        %v3014 = vpop.f32.mrf.mxu0
        %v3015 = vadd.f32 0.0, %v3014
        %3016 = vmatmul.bf16.gmra.mxu0 %v2355
        %v3017 = vpop.f32.mrf.mxu0
        %v3018 = vadd.f32 0.0, %v3017
        %v3019 = vpop.f32.mrf.mxu0
        %v3020 = vadd.f32 0.0, %v3019
        %3021 = vdwg.mxu0
        %3022 = vmatpush.bf16.msra.mxu0 %v2900
        %3023 = vmatpush.bf16.msra.mxu0 %v2899
        %3024 = vmatpush.bf16.msra.mxu0 %v2898
        %3025 = vmatpush.bf16.msra.mxu0 %v2897
        %3026 = vmatpush.bf16.msra.mxu0 %v2896
        %3027 = vmatpush.bf16.msra.mxu0 %v2895
        %3028 = vmatpush.bf16.msra.mxu0 %v2894
        %3029 = vmatpush.bf16.msra.mxu0 %v2893
        %3030 = vmatmul.bf16.gmra.mxu0 %v2431
        %v3031 = vpop.f32.mrf.mxu0
        %v3032 = vadd.f32 %v2943, %v3031
        %v3033 = vpop.f32.mrf.mxu0
        %v3034 = vadd.f32 %v2945, %v3033
        %3035 = vmatmul.bf16.gmra.mxu0 %v2443
        %v3036 = vpop.f32.mrf.mxu0
        %v3037 = vadd.f32 %v2948, %v3036
        %v3038 = vpop.f32.mrf.mxu0
        %v3039 = vadd.f32 %v2950, %v3038
        %3040 = vmatmul.bf16.gmra.mxu0 %v2455
        %v3041 = vpop.f32.mrf.mxu0
        %v3042 = vadd.f32 %v2953, %v3041
        %v3043 = vpop.f32.mrf.mxu0
        %v3044 = vadd.f32 %v2955, %v3043
        %3045 = vmatmul.bf16.gmra.mxu0 %v2467
        %v3046 = vpop.f32.mrf.mxu0
        %v3047 = vadd.f32 %v2958, %v3046
        %v3048 = vpop.f32.mrf.mxu0
        %v3049 = vadd.f32 %v2960, %v3048
        %3050 = vmatmul.bf16.gmra.mxu0 %v2479
        %v3051 = vpop.f32.mrf.mxu0
        %v3052 = vadd.f32 %v2963, %v3051
        %v3053 = vpop.f32.mrf.mxu0
        %v3054 = vadd.f32 %v2965, %v3053
        %3055 = vmatmul.bf16.gmra.mxu0 %v2491
        %v3056 = vpop.f32.mrf.mxu0
        %v3057 = vadd.f32 %v2968, %v3056
        %v3058 = vpop.f32.mrf.mxu0
        %v3059 = vadd.f32 %v2970, %v3058
        %3060 = vmatmul.bf16.gmra.mxu0 %v2503
        %v3061 = vpop.f32.mrf.mxu0
        %v3062 = vadd.f32 %v2973, %v3061
        %v3063 = vpop.f32.mrf.mxu0
        %v3064 = vadd.f32 %v2975, %v3063
        %3065 = vmatmul.bf16.gmra.mxu0 %v2515
        %v3066 = vpop.f32.mrf.mxu0
        %v3067 = vadd.f32 %v2978, %v3066
        %v3068 = vpop.f32.mrf.mxu0
        %v3069 = vadd.f32 %v2980, %v3068
        %3070 = vmatmul.bf16.gmra.mxu0 %v2527
        %v3071 = vpop.f32.mrf.mxu0
        %v3072 = vadd.f32 %v2983, %v3071
        %v3073 = vpop.f32.mrf.mxu0
        %v3074 = vadd.f32 %v2985, %v3073
        %3075 = vmatmul.bf16.gmra.mxu0 %v2539
        %v3076 = vpop.f32.mrf.mxu0
        %v3077 = vadd.f32 %v2988, %v3076
        %v3078 = vpop.f32.mrf.mxu0
        %v3079 = vadd.f32 %v2990, %v3078
        %3080 = vmatmul.bf16.gmra.mxu0 %v2551
        %v3081 = vpop.f32.mrf.mxu0
        %v3082 = vadd.f32 %v2993, %v3081
        %v3083 = vpop.f32.mrf.mxu0
        %v3084 = vadd.f32 %v2995, %v3083
        %3085 = vmatmul.bf16.gmra.mxu0 %v2563
        %v3086 = vpop.f32.mrf.mxu0
        %v3087 = vadd.f32 %v2998, %v3086
        %v3088 = vpop.f32.mrf.mxu0
        %v3089 = vadd.f32 %v3000, %v3088
        %3090 = vmatmul.bf16.gmra.mxu0 %v2575
        %v3091 = vpop.f32.mrf.mxu0
        %v3092 = vadd.f32 %v3003, %v3091
        %v3093 = vpop.f32.mrf.mxu0
        %v3094 = vadd.f32 %v3005, %v3093
        %3095 = vmatmul.bf16.gmra.mxu0 %v2587
        %v3096 = vpop.f32.mrf.mxu0
        %v3097 = vadd.f32 %v3008, %v3096
        %v3098 = vpop.f32.mrf.mxu0
        %v3099 = vadd.f32 %v3010, %v3098
        %3100 = vmatmul.bf16.gmra.mxu0 %v2599
        %v3101 = vpop.f32.mrf.mxu0
        %v3102 = vadd.f32 %v3013, %v3101
        %v3103 = vpop.f32.mrf.mxu0
        %v3104 = vadd.f32 %v3015, %v3103
        %3105 = vmatmul.bf16.gmra.mxu0 %v2611
        %v3106 = vpop.f32.mrf.mxu0
        %v3107 = vadd.f32 %v3018, %v3106
        %v3108 = vpop.f32.mrf.mxu0
        %v3109 = vadd.f32 %v3020, %v3108
        %3110 = vdwg.mxu0
        %3111 = vmatpush.bf16.msra.mxu0 %v2908
        %3112 = vmatpush.bf16.msra.mxu0 %v2907
        %3113 = vmatpush.bf16.msra.mxu0 %v2906
        %3114 = vmatpush.bf16.msra.mxu0 %v2905
        %3115 = vmatpush.bf16.msra.mxu0 %v2904
        %3116 = vmatpush.bf16.msra.mxu0 %v2903
        %3117 = vmatpush.bf16.msra.mxu0 %v2902
        %3118 = vmatpush.bf16.msra.mxu0 %v2901
        %3119 = vmatmul.bf16.gmra.mxu0 %v2678
        %v3120 = vpop.f32.mrf.mxu0
        %v3121 = vadd.f32 %v3032, %v3120
        %v3122 = vpop.f32.mrf.mxu0
        %v3123 = vadd.f32 %v3034, %v3122
        %3124 = vmatmul.bf16.gmra.mxu0 %v2681
        %v3125 = vpop.f32.mrf.mxu0
        %v3126 = vadd.f32 %v3037, %v3125
        %v3127 = vpop.f32.mrf.mxu0
        %v3128 = vadd.f32 %v3039, %v3127
        %3129 = vmatmul.bf16.gmra.mxu0 %v2684
        %v3130 = vpop.f32.mrf.mxu0
        %v3131 = vadd.f32 %v3042, %v3130
        %v3132 = vpop.f32.mrf.mxu0
        %v3133 = vadd.f32 %v3044, %v3132
        %3134 = vmatmul.bf16.gmra.mxu0 %v2687
        %v3135 = vpop.f32.mrf.mxu0
        %v3136 = vadd.f32 %v3047, %v3135
        %v3137 = vpop.f32.mrf.mxu0
        %v3138 = vadd.f32 %v3049, %v3137
        %3139 = vmatmul.bf16.gmra.mxu0 %v2690
        %v3140 = vpop.f32.mrf.mxu0
        %v3141 = vadd.f32 %v3052, %v3140
        %v3142 = vpop.f32.mrf.mxu0
        %v3143 = vadd.f32 %v3054, %v3142
        %3144 = vmatmul.bf16.gmra.mxu0 %v2693
        %v3145 = vpop.f32.mrf.mxu0
        %v3146 = vadd.f32 %v3057, %v3145
        %v3147 = vpop.f32.mrf.mxu0
        %v3148 = vadd.f32 %v3059, %v3147
        %3149 = vmatmul.bf16.gmra.mxu0 %v2696
        %v3150 = vpop.f32.mrf.mxu0
        %v3151 = vadd.f32 %v3062, %v3150
        %v3152 = vpop.f32.mrf.mxu0
        %v3153 = vadd.f32 %v3064, %v3152
        %3154 = vmatmul.bf16.gmra.mxu0 %v2699
        %v3155 = vpop.f32.mrf.mxu0
        %v3156 = vadd.f32 %v3067, %v3155
        %v3157 = vpop.f32.mrf.mxu0
        %v3158 = vadd.f32 %v3069, %v3157
        %3159 = vmatmul.bf16.gmra.mxu0 %v2702
        %v3160 = vpop.f32.mrf.mxu0
        %v3161 = vadd.f32 %v3072, %v3160
        %v3162 = vpop.f32.mrf.mxu0
        %v3163 = vadd.f32 %v3074, %v3162
        %3164 = vmatmul.bf16.gmra.mxu0 %v2705
        %v3165 = vpop.f32.mrf.mxu0
        %v3166 = vadd.f32 %v3077, %v3165
        %v3167 = vpop.f32.mrf.mxu0
        %v3168 = vadd.f32 %v3079, %v3167
        %3169 = vmatmul.bf16.gmra.mxu0 %v2708
        %v3170 = vpop.f32.mrf.mxu0
        %v3171 = vadd.f32 %v3082, %v3170
        %v3172 = vpop.f32.mrf.mxu0
        %v3173 = vadd.f32 %v3084, %v3172
        %3174 = vmatmul.bf16.gmra.mxu0 %v2711
        %v3175 = vpop.f32.mrf.mxu0
        %v3176 = vadd.f32 %v3087, %v3175
        %v3177 = vpop.f32.mrf.mxu0
        %v3178 = vadd.f32 %v3089, %v3177
        %3179 = vmatmul.bf16.gmra.mxu0 %v2714
        %v3180 = vpop.f32.mrf.mxu0
        %v3181 = vadd.f32 %v3092, %v3180
        %v3182 = vpop.f32.mrf.mxu0
        %v3183 = vadd.f32 %v3094, %v3182
        %3184 = vmatmul.bf16.gmra.mxu0 %v2717
        %v3185 = vpop.f32.mrf.mxu0
        %v3186 = vadd.f32 %v3097, %v3185
        %v3187 = vpop.f32.mrf.mxu0
        %v3188 = vadd.f32 %v3099, %v3187
        %3189 = vmatmul.bf16.gmra.mxu0 %v2720
        %v3190 = vpop.f32.mrf.mxu0
        %v3191 = vadd.f32 %v3102, %v3190
        %v3192 = vpop.f32.mrf.mxu0
        %v3193 = vadd.f32 %v3104, %v3192
        %3194 = vmatmul.bf16.gmra.mxu0 %v2723
        %v3195 = vpop.f32.mrf.mxu0
        %v3196 = vadd.f32 %v3107, %v3195
        %v3197 = vpop.f32.mrf.mxu0
        %v3198 = vadd.f32 %v3109, %v3197
        %3199 = vdwg.mxu0
        %v3200 = vadd.f32 %v2129, %v3121
        %v3201 = vadd.f32 %v2131, %v3123
        %v3202 = vadd.f32 %v2134, %v3126
        %v3203 = vadd.f32 %v2136, %v3128
        %v3204 = vadd.f32 %v2139, %v3131
        %v3205 = vadd.f32 %v2141, %v3133
        %v3206 = vadd.f32 %v2144, %v3136
        %v3207 = vadd.f32 %v2146, %v3138
        %v3208 = vadd.f32 %v2149, %v3141
        %v3209 = vadd.f32 %v2151, %v3143
        %v3210 = vadd.f32 %v2154, %v3146
        %v3211 = vadd.f32 %v2156, %v3148
        %v3212 = vadd.f32 %v2159, %v3151
        %v3213 = vadd.f32 %v2161, %v3153
        %v3214 = vadd.f32 %v2164, %v3156
        %v3215 = vadd.f32 %v2166, %v3158
        %v3216 = vadd.f32 %v2169, %v3161
        %v3217 = vadd.f32 %v2171, %v3163
        %v3218 = vadd.f32 %v2174, %v3166
        %v3219 = vadd.f32 %v2176, %v3168
        %v3220 = vadd.f32 %v2179, %v3171
        %v3221 = vadd.f32 %v2181, %v3173
        %v3222 = vadd.f32 %v2184, %v3176
        %v3223 = vadd.f32 %v2186, %v3178
        %v3224 = vadd.f32 %v2189, %v3181
        %v3225 = vadd.f32 %v2191, %v3183
        %v3226 = vadd.f32 %v2194, %v3186
        %v3227 = vadd.f32 %v2196, %v3188
        %v3228 = vadd.f32 %v2199, %v3191
        %v3229 = vadd.f32 %v2201, %v3193
        %v3230 = vadd.f32 %v2204, %v3196
        %v3231 = vadd.f32 %v2206, %v3198
        %v3232 = vld [vmem:[%s2] sm:$0x1]
        %v3234 = vperm.slane %v3232, 0
        %v3236 = vadd.f32 %v3200, %v3234
        %v3237 = vadd.f32 %v3201, %v3234
        %v3238 = vadd.f32 %v3202, %v3234
        %v3239 = vadd.f32 %v3203, %v3234
        %v3240 = vadd.f32 %v3204, %v3234
        %v3241 = vadd.f32 %v3205, %v3234
        %v3242 = vadd.f32 %v3206, %v3234
        %v3243 = vadd.f32 %v3207, %v3234
        %v3244 = vadd.f32 %v3208, %v3234
        %v3245 = vadd.f32 %v3209, %v3234
        %v3246 = vadd.f32 %v3210, %v3234
        %v3247 = vadd.f32 %v3211, %v3234
        %v3248 = vadd.f32 %v3212, %v3234
        %v3249 = vadd.f32 %v3213, %v3234
        %v3250 = vadd.f32 %v3214, %v3234
        %v3251 = vadd.f32 %v3215, %v3234
        %v3252 = vadd.f32 %v3216, %v3234
        %v3253 = vadd.f32 %v3217, %v3234
        %v3254 = vadd.f32 %v3218, %v3234
        %v3255 = vadd.f32 %v3219, %v3234
        %v3256 = vadd.f32 %v3220, %v3234
        %v3257 = vadd.f32 %v3221, %v3234
        %v3258 = vadd.f32 %v3222, %v3234
        %v3259 = vadd.f32 %v3223, %v3234
        %v3260 = vadd.f32 %v3224, %v3234
        %v3261 = vadd.f32 %v3225, %v3234
        %v3262 = vadd.f32 %v3226, %v3234
        %v3263 = vadd.f32 %v3227, %v3234
        %v3264 = vadd.f32 %v3228, %v3234
        %v3265 = vadd.f32 %v3229, %v3234
        %v3266 = vadd.f32 %v3230, %v3234
        %v3267 = vadd.f32 %v3231, %v3234
        %v3268 = vpack.c.bf16 %v3236, %v3236
        %v3269 = vpack.c.bf16 %v3237, %v3237
        %v3270 = vpack.c.bf16 %v3238, %v3238
        %v3271 = vpack.c.bf16 %v3239, %v3239
        %v3272 = vpack.c.bf16 %v3240, %v3240
        %v3273 = vpack.c.bf16 %v3241, %v3241
        %v3274 = vpack.c.bf16 %v3242, %v3242
        %v3275 = vpack.c.bf16 %v3243, %v3243
        %v3276 = vpack.c.bf16 %v3244, %v3244
        %v3277 = vpack.c.bf16 %v3245, %v3245
        %v3278 = vpack.c.bf16 %v3246, %v3246
        %v3279 = vpack.c.bf16 %v3247, %v3247
        %v3280 = vpack.c.bf16 %v3248, %v3248
        %v3281 = vpack.c.bf16 %v3249, %v3249
        %v3282 = vpack.c.bf16 %v3250, %v3250
        %v3283 = vpack.c.bf16 %v3251, %v3251
        %v3284 = vpack.c.bf16 %v3252, %v3252
        %v3285 = vpack.c.bf16 %v3253, %v3253
        %v3286 = vpack.c.bf16 %v3254, %v3254
        %v3287 = vpack.c.bf16 %v3255, %v3255
        %v3288 = vpack.c.bf16 %v3256, %v3256
        %v3289 = vpack.c.bf16 %v3257, %v3257
        %v3290 = vpack.c.bf16 %v3258, %v3258
        %v3291 = vpack.c.bf16 %v3259, %v3259
        %v3292 = vpack.c.bf16 %v3260, %v3260
        %v3293 = vpack.c.bf16 %v3261, %v3261
        %v3294 = vpack.c.bf16 %v3262, %v3262
        %v3295 = vpack.c.bf16 %v3263, %v3263
        %v3296 = vpack.c.bf16 %v3264, %v3264
        %v3297 = vpack.c.bf16 %v3265, %v3265
        %v3298 = vpack.c.bf16 %v3266, %v3266
        %v3299 = vpack.c.bf16 %v3267, %v3267
        %3300 = vst [vmem:[%s221] sm:$0xf] %v3268
        %3301 = vst [vmem:[%s221 + $0x4] sm:$0xf] %v3269
        %3302 = vst [vmem:[%s221 + $0x8] sm:$0xf] %v3270
        %3303 = vst [vmem:[%s221 + $0xc] sm:$0xf] %v3271
        %3304 = vst [vmem:[%s221 + $0x10] sm:$0xf] %v3272
        %3305 = vst [vmem:[%s221 + $0x14] sm:$0xf] %v3273
        %3306 = vst [vmem:[%s221 + $0x18] sm:$0xf] %v3274
        %3307 = vst [vmem:[%s221 + $0x1c] sm:$0xf] %v3275
        %3308 = vst [vmem:[%s221 + $0x20] sm:$0xf] %v3276
        %3309 = vst [vmem:[%s221 + $0x24] sm:$0xf] %v3277
        %3310 = vst [vmem:[%s221 + $0x28] sm:$0xf] %v3278
        %3311 = vst [vmem:[%s221 + $0x2c] sm:$0xf] %v3279
        %3312 = vst [vmem:[%s221 + $0x30] sm:$0xf] %v3280
        %3313 = vst [vmem:[%s221 + $0x34] sm:$0xf] %v3281
        %3314 = vst [vmem:[%s221 + $0x38] sm:$0xf] %v3282
        %3315 = vst [vmem:[%s221 + $0x3c] sm:$0xf] %v3283
        %3316 = vst [vmem:[%s221 + $0x40] sm:$0xf] %v3284
        %3317 = vst [vmem:[%s221 + $0x44] sm:$0xf] %v3285
        %3318 = vst [vmem:[%s221 + $0x48] sm:$0xf] %v3286
        %3319 = vst [vmem:[%s221 + $0x4c] sm:$0xf] %v3287
        %3320 = vst [vmem:[%s221 + $0x50] sm:$0xf] %v3288
        %3321 = vst [vmem:[%s221 + $0x54] sm:$0xf] %v3289
        %3322 = vst [vmem:[%s221 + $0x58] sm:$0xf] %v3290
        %3323 = vst [vmem:[%s221 + $0x5c] sm:$0xf] %v3291
        %3324 = vst [vmem:[%s221 + $0x60] sm:$0xf] %v3292
        %3325 = vst [vmem:[%s221 + $0x64] sm:$0xf] %v3293
        %3326 = vst [vmem:[%s221 + $0x68] sm:$0xf] %v3294
        %3327 = vst [vmem:[%s221 + $0x6c] sm:$0xf] %v3295
        %3328 = vst [vmem:[%s221 + $0x70] sm:$0xf] %v3296
        %3329 = vst [vmem:[%s221 + $0x74] sm:$0xf] %v3297
        %3330 = vst [vmem:[%s221 + $0x78] sm:$0xf] %v3298
        %3331 = vst [vmem:[%s221 + $0x7c] sm:$0xf] %v3299
        %s3332 = sand.u32 %s111, 1
        %s3333 = scalar_lea.sflag [#allocation4], %s3332
        %s3334 = sand.u32 %s111, 1
        %s3335 = smul.addr %s3334, 128
        %s3336 = scalar_lea.vmem [#allocation7], %s3335
        // Predicated region
        $region41: #{tpu_custom_call.1} parent=31 // pred_check
          %p3337 = pneg %p121
        $region42: #{tpu_custom_call.1} parent=31 // pred_check_branch
          %3339 = sbr.rel (%p3337) target = $region44
        $region43: #{tpu_custom_call.1} parent=31 // pred_region
          %s3340 = smul.u32 16, %s26
          %3342 = vsyncadd %s3333, 0
          %s3343 = smul.addr %s3340, 2
          %s3344 = smul.addr %s25, 32
          %s3345 = sadd.s32 %s3343, %s3344
          %s3346 = smul.addr %s3345, 4
          %s3347 = scalar_lea.hbm %s3, %s3346
          %s3348 = sshll.u32 %s3336, 4
          %s3349 = int_to_ptr.vmem [resolvable:$true] %s3348
          %s3350 = sshll.u32 %s3347, 4
          %s3351 = int_to_ptr.hbm [resolvable:$true] %s3350
          %3356 = dma.vmem_to_hbm [thread:$0]  %s3349, 2048, %s3351, %s3333, 64, 64, 4
        $region44: #{tpu_custom_call.1} parent=31 // pred_fallthru
          _
      $region32: #{tpu_custom_call.1} parent=5 // pred_fallthru
        _
      %p3357 = scmp.le.s32.totalorder 2, %s16
      // Predicated region
      $region45: #{tpu_custom_call.1} parent=5 // pred_check
        %p3358 = pneg %p3357
      $region46: #{tpu_custom_call.1} parent=5 // pred_check_branch
        %3360 = sbr.rel (%p3358) target = $region48
      $region47: #{tpu_custom_call.1} parent=5 // pred_region
        %s3361 = ssub.s32 %s16, 2
        // Predicated region
        $region49: #{tpu_custom_call.1} parent=47 // pred_check
          %p3362 = pneg %p127
        $region50: #{tpu_custom_call.1} parent=47 // pred_check_branch
          %3364 = sbr.rel (%p3362) target = $region52
        $region51: #{tpu_custom_call.1} parent=47 // pred_region
          %s3365 = sand.u32 %s112, 1
          %s3366 = scalar_lea.sflag [#allocation4], %s3365
          %s3367 = sand.u32 %s112, 1
          %s3368 = smul.addr %s3367, 128
          %s3369 = scalar_lea.vmem [#allocation7], %s3368
          %3371 = dma.done %s3366, 2048
        $region52: #{tpu_custom_call.1} parent=47 // pred_fallthru
          _
      $region48: #{tpu_custom_call.1} parent=5 // pred_fallthru
        _
    $region6: #{tpu_custom_call.1} parent=1 // loop_footer
      %s20 = sadd.s32 1, %s16
    $region7: #{tpu_custom_call.1} parent=1 // loop_footer_branch
      %15 = sbr.rel target = $region3
    $region8: #{tpu_custom_call.1} parent=1 // loop_exit
      _
    %3372 = vsyncpa [#allocation3], 1
    %s3373 = scalar_lea.sflag [#allocation3], 1
    %3374 = vsyncpa %s3373, 1
    %3375 = vsyncpa [#allocation6], 1
    %3376 = vsyncpa [#allocation4], 1
    %s3377 = scalar_lea.sflag [#allocation4], 1
    %3378 = vsyncpa %s3377, 1

</llo_original>
